<compile_context>
chip_gen: v7x
topology: tpu7x:2x2x1
jax: 0.10.0
libtpu: 0.0.40
codegen_flags: <defaults>
</compile_context>

<pallas_src>
import jax
import jax.numpy as jnp
from jax import lax
from jax.experimental import pallas as pl
from jax.experimental.pallas import tpu as pltpu


def _round_up(x, m):
    return (x + m - 1) // m * m


def _siamese_kernel(i_ref, j_ref,                          # [1, TB] int32 (lane-dense)
                    embT_ref,                              # [D, N_pad] table^T, VMEM-resident
                    w1_ref, b1_ref, w2_ref, b2_ref, w3_ref, b3_ref,   # transposed tower
                    wa_ref, wb_ref, wp_ref, bx_ref,        # folded final Linear(128,1)
                    out_ref):                              # [1, TB] sigmoid scores
    n_pad = embT_ref.shape[1]
    tb = out_ref.shape[1]

    # Shared ReLU tower over ALL nodes (transposed layout: features on sublanes,
    # nodes on lanes).  Per-row network commutes with the gather, so this is
    # exactly tower(emb)[i].  Recomputed per batch tile: N is small, the extra
    # MXU work is negligible and it keeps the batch grid axis fully parallel.
    h = jnp.maximum(jnp.dot(w1_ref[...], embT_ref[...],
                            preferred_element_type=jnp.float32) + b1_ref[...], 0.0)
    h = jnp.maximum(jnp.dot(w2_ref[...], h,
                            preferred_element_type=jnp.float32) + b2_ref[...], 0.0)
    h = jnp.maximum(jnp.dot(w3_ref[...], h,
                            preferred_element_type=jnp.float32) + b3_ref[...], 0.0)
    # h: [32, N_pad] == tower(emb)^T

    # One-hot gather of both branches on the MXU (no scalar gather loops).
    node = lax.broadcasted_iota(jnp.int32, (n_pad, tb), 0)
    oh_i = (node == i_ref[...]).astype(jnp.float32)        # [N_pad, TB]
    oh_j = (node == j_ref[...]).astype(jnp.float32)        # [N_pad, TB]
    a = jnp.dot(h, oh_i, preferred_element_type=jnp.float32)   # [32, TB] = x1^T
    b = jnp.dot(h, oh_j, preferred_element_type=jnp.float32)   # [32, TB] = x2^T

    # Final Linear(128, 1) over [x1, x2, x1-x2, x1*x2] folded algebraically:
    #   logit = x1@(w_x1 + w_diff) + x2@(w_x2 - w_diff) + (x1*x2)@w_prod + bias
    # No lane concat, no cross-lane reduce; everything lands lane-dense [1, TB].
    logit = (jnp.dot(wa_ref[...], a, preferred_element_type=jnp.float32)
             + jnp.dot(wb_ref[...], b, preferred_element_type=jnp.float32)
             + jnp.dot(wp_ref[...], a * b, preferred_element_type=jnp.float32)
             + bx_ref[...])
    out_ref[...] = jax.nn.sigmoid(logit)


def siamese_forward(embedding_table, i_idx, j_idx, params, *, tile=512):
    """Fused per-node tower + MXU one-hot gather + comparison head.

    embedding_table: [N, 256] f32 node embeddings (stand-in for Net() output).
    i_idx, j_idx:    [B] int node indices.
    Returns sigmoid scores [B, 1] (matches SiameseNetwork.forward).
    """
    N, D = embedding_table.shape
    B = int(i_idx.shape[0])
    N_pad = _round_up(N, 8)

    # Batch tiling: lane-dense output blocks, always a multiple of 128.
    B128 = _round_up(max(B, 1), 128)
    if B128 <= tile:
        TB = B128
        num_tiles = 1
    else:
        assert tile % 128 == 0, "tile must be a multiple of 128 for lane-dense output"
        TB = tile
        num_tiles = pl.cdiv(B, TB)
    B_pad = num_tiles * TB

    # Transposed, padded embedding table: features on sublanes, nodes on lanes.
    emb_T = jnp.zeros((D, N_pad), jnp.float32).at[:, :N].set(embedding_table.T)

    def pad_idx(idx):
        return jnp.zeros((1, B_pad), jnp.int32).at[0, :B].set(idx.astype(jnp.int32))

    i_pad, j_pad = pad_idx(i_idx), pad_idx(j_idx)

    # Fold the Linear(128,1) weight over [x1, x2, x1-x2, x1*x2] into three 32-wide pieces.
    wx = params["wx"]                      # [1, 128]
    wa = wx[:, 0:32] + wx[:, 64:96]        # multiplies x1
    wb = wx[:, 32:64] - wx[:, 64:96]       # multiplies x2
    wp = wx[:, 96:128]                     # multiplies x1 * x2

    # Tower weights in transposed (out, in) layout; biases as columns.
    w1t, b1c = params["w1"].T, params["b1"].reshape(128, 1)
    w2t, b2c = params["w2"].T, params["b2"].reshape(64, 1)
    w3t, b3c = params["w3"].T, params["b3"].reshape(32, 1)

    const = lambda shape: pl.BlockSpec(shape, lambda t: (0, 0))   # VMEM-resident
    tiled = lambda shape: pl.BlockSpec(shape, lambda t: (0, t))   # batch-tiled

    out = pl.pallas_call(
        _siamese_kernel,
        out_shape=jax.ShapeDtypeStruct((1, B_pad), jnp.float32),
        grid_spec=pltpu.PrefetchScalarGridSpec(
            num_scalar_prefetch=0,
            grid=(num_tiles,),
            in_specs=[
                tiled((1, TB)),                       # i indices
                tiled((1, TB)),                       # j indices
                const((D, N_pad)),                    # embedding table^T
                const((128, D)), const((128, 1)),     # fc1^T
                const((64, 128)), const((64, 1)),     # fc2^T
                const((32, 64)), const((32, 1)),      # fc3^T
                const((1, 32)), const((1, 32)), const((1, 32)),   # folded final weights
                const((1, 1)),                        # final bias
            ],
            out_specs=tiled((1, TB)),
        ),
        compiler_params=pltpu.CompilerParams(
            dimension_semantics=("parallel",),        # megacore: batch tiles across TCs
        ),
    )(i_pad, j_pad, emb_T,
      w1t, b1c, w2t, b2c, w3t, b3c, wa, wb, wp, params["bx"])

    return out[0, :B].reshape(B, 1)


def _init_linear(key, fan_in, fan_out):
    # matches torch.nn.Linear default init: U(-1/sqrt(fan_in), 1/sqrt(fan_in))
    kw, kb = jax.random.split(key)
    bound = 1.0 / jnp.sqrt(jnp.float32(fan_in))
    w = jax.random.uniform(kw, (fan_in, fan_out), jnp.float32, -bound, bound)
    b = jax.random.uniform(kb, (1, fan_out), jnp.float32, -bound, bound)
    return w, b


def init_params(key):
    k1, k2, k3, k4 = jax.random.split(key, 4)
    w1, b1 = _init_linear(k1, 256, 128)    # fc1
    w2, b2 = _init_linear(k2, 128, 64)     # fc2
    w3, b3 = _init_linear(k3, 64, 32)      # fc3
    wx_t, bx = _init_linear(k4, 128, 1)    # self.x : Linear(128, 1)
    return {
        "w1": w1, "b1": b1,
        "w2": w2, "b2": b2,
        "w3": w3, "b3": b3,
        "wx": wx_t.reshape(1, 128),        # row layout: 128-wide axis on lanes
        "bx": bx.reshape(1, 1),
    }


def ref_forward(emb, i_idx, j_idx, p):
    """Pure-JAX reference of the same Siamese head (un-fused, un-folded)."""
    x1 = jnp.take(emb, i_idx, axis=0)
    x2 = jnp.take(emb, j_idx, axis=0)

    def tower(x):
        h = jnp.maximum(x @ p["w1"] + p["b1"], 0.0)
        h = jnp.maximum(h @ p["w2"] + p["b2"], 0.0)
        h = jnp.maximum(h @ p["w3"] + p["b3"], 0.0)
        return h

    a, b = tower(x1), tower(x2)
    feat = jnp.concatenate([a, b, a - b, a * b], axis=-1)
    return jax.nn.sigmoid(feat @ p["wx"].T + p["bx"])


if __name__ == "__main__":
    key = jax.random.PRNGKey(0)
    k_emb, k_par, k_i, k_j = jax.random.split(key, 4)

    N, D, B = 64, 256, 200   # 64 nodes, 256-dim embeddings, 200 (i, j) pairs

    # Synthetic stand-in for Net() output: per-node log_softmax over 256 dims.
    embedding_table = jax.nn.log_softmax(
        jax.random.normal(k_emb, (N, D), jnp.float32), axis=1)

    params = init_params(k_par)
    i_idx = jax.random.randint(k_i, (B,), 0, N, dtype=jnp.int32)
    j_idx = jax.random.randint(k_j, (B,), 0, N, dtype=jnp.int32)

    # tile=128 -> 2 batch tiles: exercises the grid, index padding and megacore path.
    out = siamese_forward(embedding_table, i_idx, j_idx, params, tile=128)
    out = jax.block_until_ready(out)

    expected = ref_forward(embedding_table, i_idx, j_idx, params)
    assert out.shape == (B, 1)
    max_err = jnp.max(jnp.abs(out - expected))
    assert jnp.allclose(out, expected, atol=5e-5), f"mismatch vs reference: {max_err}"

    print("KERNEL_OK")
</pallas_src>

<mosaic_0001>
module attributes {stable_mosaic.version = 11 : i64} {
  func.func @_siamese_kernel(%arg0: i32, %arg1: memref<1x128xi32, #tpu.memory_space<vmem>>, %arg2: memref<1x128xi32, #tpu.memory_space<vmem>>, %arg3: memref<256x64xf32, #tpu.memory_space<vmem>>, %arg4: memref<128x256xf32, #tpu.memory_space<vmem>>, %arg5: memref<128x1xf32, #tpu.memory_space<vmem>>, %arg6: memref<64x128xf32, #tpu.memory_space<vmem>>, %arg7: memref<64x1xf32, #tpu.memory_space<vmem>>, %arg8: memref<32x64xf32, #tpu.memory_space<vmem>>, %arg9: memref<32x1xf32, #tpu.memory_space<vmem>>, %arg10: memref<1x32xf32, #tpu.memory_space<vmem>>, %arg11: memref<1x32xf32, #tpu.memory_space<vmem>>, %arg12: memref<1x32xf32, #tpu.memory_space<vmem>>, %arg13: memref<1x1xf32, #tpu.memory_space<vmem>>, %arg14: memref<1x128xf32, #tpu.memory_space<vmem>>) attributes {dimension_semantics = [#tpu.dimension_semantics<parallel>], iteration_bounds = array<i64: 2>, scalar_prefetch = 0 : i64, scratch_operands = 0 : i64, tpu.core_type = #tpu.core_type<tc>, window_params = [{transform_indices = @transform_0, window_bounds = array<i64: 1, 128>}, {transform_indices = @transform_1, window_bounds = array<i64: 1, 128>}, {pipeline_mode = #tpu.pipeline_mode<synchronous>, transform_indices = @transform_2, window_bounds = array<i64: 256, 64>}, {pipeline_mode = #tpu.pipeline_mode<synchronous>, transform_indices = @transform_3, window_bounds = array<i64: 128, 256>}, {pipeline_mode = #tpu.pipeline_mode<synchronous>, transform_indices = @transform_4, window_bounds = array<i64: 128, 1>}, {pipeline_mode = #tpu.pipeline_mode<synchronous>, transform_indices = @transform_5, window_bounds = array<i64: 64, 128>}, {pipeline_mode = #tpu.pipeline_mode<synchronous>, transform_indices = @transform_6, window_bounds = array<i64: 64, 1>}, {pipeline_mode = #tpu.pipeline_mode<synchronous>, transform_indices = @transform_7, window_bounds = array<i64: 32, 64>}, {pipeline_mode = #tpu.pipeline_mode<synchronous>, transform_indices = @transform_8, window_bounds = array<i64: 32, 1>}, {pipeline_mode = #tpu.pipeline_mode<synchronous>, transform_indices = @transform_9, window_bounds = array<i64: 1, 32>}, {pipeline_mode = #tpu.pipeline_mode<synchronous>, transform_indices = @transform_10, window_bounds = array<i64: 1, 32>}, {pipeline_mode = #tpu.pipeline_mode<synchronous>, transform_indices = @transform_11, window_bounds = array<i64: 1, 32>}, {pipeline_mode = #tpu.pipeline_mode<synchronous>, transform_indices = @transform_12, window_bounds = array<i64: 1, 1>}, {transform_indices = @transform_13, window_bounds = array<i64: 1, 128>}]} {
    %c0 = arith.constant 0 : index
    %c0_0 = arith.constant 0 : index
    %0 = vector.load %arg4[%c0, %c0_0] : memref<128x256xf32, #tpu.memory_space<vmem>>, vector<128x256xf32>
    %c0_1 = arith.constant 0 : index
    %c0_2 = arith.constant 0 : index
    %1 = vector.load %arg3[%c0_1, %c0_2] : memref<256x64xf32, #tpu.memory_space<vmem>>, vector<256x64xf32>
    %cst = arith.constant dense<0.000000e+00> : vector<128x64xf32>
    %2 = tpu.matmul %0, %1, %cst {dimension_numbers = #tpu.dot_dimension_numbers<[1], [0], [0], [1], [0, 0, 1, 1], [], []>} : vector<128x256xf32>, vector<256x64xf32>, vector<128x64xf32> -> vector<128x64xf32>
    %c0_3 = arith.constant 0 : index
    %c0_4 = arith.constant 0 : index
    %3 = vector.load %arg5[%c0_3, %c0_4] : memref<128x1xf32, #tpu.memory_space<vmem>>, vector<128x1xf32>
    %4 = vector.broadcast %3 : vector<128x1xf32> to vector<128x64xf32>
    %5 = arith.addf %2, %4 : vector<128x64xf32>
    %cst_5 = arith.constant 0.000000e+00 : f32
    %6 = vector.broadcast %cst_5 : f32 to vector<128x64xf32>
    %7 = arith.maximumf %5, %6 : vector<128x64xf32>
    %c0_6 = arith.constant 0 : index
    %c0_7 = arith.constant 0 : index
    %8 = vector.load %arg6[%c0_6, %c0_7] : memref<64x128xf32, #tpu.memory_space<vmem>>, vector<64x128xf32>
    %cst_8 = arith.constant dense<0.000000e+00> : vector<64x64xf32>
    %9 = tpu.matmul %8, %7, %cst_8 {dimension_numbers = #tpu.dot_dimension_numbers<[1], [0], [0], [1], [0, 0, 1, 1], [], []>} : vector<64x128xf32>, vector<128x64xf32>, vector<64x64xf32> -> vector<64x64xf32>
    %c0_9 = arith.constant 0 : index
    %c0_10 = arith.constant 0 : index
    %10 = vector.load %arg7[%c0_9, %c0_10] : memref<64x1xf32, #tpu.memory_space<vmem>>, vector<64x1xf32>
    %11 = vector.broadcast %10 : vector<64x1xf32> to vector<64x64xf32>
    %12 = arith.addf %9, %11 : vector<64x64xf32>
    %cst_11 = arith.constant 0.000000e+00 : f32
    %13 = vector.broadcast %cst_11 : f32 to vector<64x64xf32>
    %14 = arith.maximumf %12, %13 : vector<64x64xf32>
    %c0_12 = arith.constant 0 : index
    %c0_13 = arith.constant 0 : index
    %15 = vector.load %arg8[%c0_12, %c0_13] : memref<32x64xf32, #tpu.memory_space<vmem>>, vector<32x64xf32>
    %cst_14 = arith.constant dense<0.000000e+00> : vector<32x64xf32>
    %16 = tpu.matmul %15, %14, %cst_14 {dimension_numbers = #tpu.dot_dimension_numbers<[1], [0], [0], [1], [0, 0, 1, 1], [], []>} : vector<32x64xf32>, vector<64x64xf32>, vector<32x64xf32> -> vector<32x64xf32>
    %c0_15 = arith.constant 0 : index
    %c0_16 = arith.constant 0 : index
    %17 = vector.load %arg9[%c0_15, %c0_16] : memref<32x1xf32, #tpu.memory_space<vmem>>, vector<32x1xf32>
    %18 = vector.broadcast %17 : vector<32x1xf32> to vector<32x64xf32>
    %19 = arith.addf %16, %18 : vector<32x64xf32>
    %cst_17 = arith.constant 0.000000e+00 : f32
    %20 = vector.broadcast %cst_17 : f32 to vector<32x64xf32>
    %21 = arith.maximumf %19, %20 : vector<32x64xf32>
    %22 = tpu.iota {dimensions = array<i32: 0>} : vector<64x128xi32>
    %c0_18 = arith.constant 0 : index
    %c0_19 = arith.constant 0 : index
    %23 = vector.load %arg1[%c0_18, %c0_19] : memref<1x128xi32, #tpu.memory_space<vmem>>, vector<1x128xi32>
    %24 = vector.broadcast %23 : vector<1x128xi32> to vector<64x128xi32>
    %25 = arith.cmpi eq, %22, %24 : vector<64x128xi32>
    %26 = arith.extui %25 : vector<64x128xi1> to vector<64x128xi32>
    %27 = arith.sitofp %26 : vector<64x128xi32> to vector<64x128xf32>
    %c0_20 = arith.constant 0 : index
    %c0_21 = arith.constant 0 : index
    %28 = vector.load %arg2[%c0_20, %c0_21] : memref<1x128xi32, #tpu.memory_space<vmem>>, vector<1x128xi32>
    %29 = vector.broadcast %28 : vector<1x128xi32> to vector<64x128xi32>
    %30 = arith.cmpi eq, %22, %29 : vector<64x128xi32>
    %31 = arith.extui %30 : vector<64x128xi1> to vector<64x128xi32>
    %32 = arith.sitofp %31 : vector<64x128xi32> to vector<64x128xf32>
    %cst_22 = arith.constant dense<0.000000e+00> : vector<32x128xf32>
    %33 = tpu.matmul %21, %27, %cst_22 {dimension_numbers = #tpu.dot_dimension_numbers<[1], [0], [0], [1], [0, 0, 1, 1], [], []>} : vector<32x64xf32>, vector<64x128xf32>, vector<32x128xf32> -> vector<32x128xf32>
    %cst_23 = arith.constant dense<0.000000e+00> : vector<32x128xf32>
    %34 = tpu.matmul %21, %32, %cst_23 {dimension_numbers = #tpu.dot_dimension_numbers<[1], [0], [0], [1], [0, 0, 1, 1], [], []>} : vector<32x64xf32>, vector<64x128xf32>, vector<32x128xf32> -> vector<32x128xf32>
    %c0_24 = arith.constant 0 : index
    %c0_25 = arith.constant 0 : index
    %35 = vector.load %arg10[%c0_24, %c0_25] : memref<1x32xf32, #tpu.memory_space<vmem>>, vector<1x32xf32>
    %cst_26 = arith.constant dense<0.000000e+00> : vector<1x128xf32>
    %36 = tpu.matmul %35, %33, %cst_26 {dimension_numbers = #tpu.dot_dimension_numbers<[1], [0], [0], [1], [0, 0, 1, 1], [], []>} : vector<1x32xf32>, vector<32x128xf32>, vector<1x128xf32> -> vector<1x128xf32>
    %c0_27 = arith.constant 0 : index
    %c0_28 = arith.constant 0 : index
    %37 = vector.load %arg11[%c0_27, %c0_28] : memref<1x32xf32, #tpu.memory_space<vmem>>, vector<1x32xf32>
    %cst_29 = arith.constant dense<0.000000e+00> : vector<1x128xf32>
    %38 = tpu.matmul %37, %34, %cst_29 {dimension_numbers = #tpu.dot_dimension_numbers<[1], [0], [0], [1], [0, 0, 1, 1], [], []>} : vector<1x32xf32>, vector<32x128xf32>, vector<1x128xf32> -> vector<1x128xf32>
    %39 = arith.addf %36, %38 : vector<1x128xf32>
    %c0_30 = arith.constant 0 : index
    %c0_31 = arith.constant 0 : index
    %40 = vector.load %arg12[%c0_30, %c0_31] : memref<1x32xf32, #tpu.memory_space<vmem>>, vector<1x32xf32>
    %41 = arith.mulf %33, %34 : vector<32x128xf32>
    %cst_32 = arith.constant dense<0.000000e+00> : vector<1x128xf32>
    %42 = tpu.matmul %40, %41, %cst_32 {dimension_numbers = #tpu.dot_dimension_numbers<[1], [0], [0], [1], [0, 0, 1, 1], [], []>} : vector<1x32xf32>, vector<32x128xf32>, vector<1x128xf32> -> vector<1x128xf32>
    %43 = arith.addf %39, %42 : vector<1x128xf32>
    %c0_33 = arith.constant 0 : index
    %c0_34 = arith.constant 0 : index
    %44 = vector.load %arg13[%c0_33, %c0_34] : memref<1x1xf32, #tpu.memory_space<vmem>>, vector<1x1xf32>
    %45 = vector.broadcast %44 : vector<1x1xf32> to vector<1x128xf32>
    %46 = arith.addf %43, %45 : vector<1x128xf32>
    %47 = arith.negf %46 : vector<1x128xf32>
    %48 = math.exp %47 : vector<1x128xf32>
    %cst_35 = arith.constant 1.000000e+00 : f32
    %49 = vector.broadcast %cst_35 : f32 to vector<1x128xf32>
    %50 = arith.addf %49, %48 : vector<1x128xf32>
    %51 = arith.divf %49, %50 : vector<1x128xf32>
    %c0_36 = arith.constant 0 : index
    %c0_37 = arith.constant 0 : index
    %52 = vector.load %arg14[%c0_36, %c0_37] : memref<1x128xf32, #tpu.memory_space<vmem>>, vector<1x128xf32>
    tpu.vector_store %arg14[%c0_36, %c0_37], %51 {strides = array<i32>} : memref<1x128xf32, #tpu.memory_space<vmem>>, vector<1x128xf32>,
    return
  }
  func.func @transform_0(%arg0: i32) -> (i32, i32) {
    %c0_i32 = arith.constant 0 : i32
    %c0_i32_0 = arith.constant 0 : i32
    return %c0_i32, %arg0 : i32, i32
  }
  func.func @transform_1(%arg0: i32) -> (i32, i32) {
    %c0_i32 = arith.constant 0 : i32
    %c0_i32_0 = arith.constant 0 : i32
    return %c0_i32, %arg0 : i32, i32
  }
  func.func @transform_2(%arg0: i32) -> (i32, i32) {
    %c0_i32 = arith.constant 0 : i32
    %c0_i32_0 = arith.constant 0 : i32
    %c0_i32_1 = arith.constant 0 : i32
    return %c0_i32, %c0_i32_0 : i32, i32
  }
  func.func @transform_3(%arg0: i32) -> (i32, i32) {
    %c0_i32 = arith.constant 0 : i32
    %c0_i32_0 = arith.constant 0 : i32
    %c0_i32_1 = arith.constant 0 : i32
    return %c0_i32, %c0_i32_0 : i32, i32
  }
  func.func @transform_4(%arg0: i32) -> (i32, i32) {
    %c0_i32 = arith.constant 0 : i32
    %c0_i32_0 = arith.constant 0 : i32
    %c0_i32_1 = arith.constant 0 : i32
    return %c0_i32, %c0_i32_0 : i32, i32
  }
  func.func @transform_5(%arg0: i32) -> (i32, i32) {
    %c0_i32 = arith.constant 0 : i32
    %c0_i32_0 = arith.constant 0 : i32
    %c0_i32_1 = arith.constant 0 : i32
    return %c0_i32, %c0_i32_0 : i32, i32
  }
  func.func @transform_6(%arg0: i32) -> (i32, i32) {
    %c0_i32 = arith.constant 0 : i32
    %c0_i32_0 = arith.constant 0 : i32
    %c0_i32_1 = arith.constant 0 : i32
    return %c0_i32, %c0_i32_0 : i32, i32
  }
  func.func @transform_7(%arg0: i32) -> (i32, i32) {
    %c0_i32 = arith.constant 0 : i32
    %c0_i32_0 = arith.constant 0 : i32
    %c0_i32_1 = arith.constant 0 : i32
    return %c0_i32, %c0_i32_0 : i32, i32
  }
  func.func @transform_8(%arg0: i32) -> (i32, i32) {
    %c0_i32 = arith.constant 0 : i32
    %c0_i32_0 = arith.constant 0 : i32
    %c0_i32_1 = arith.constant 0 : i32
    return %c0_i32, %c0_i32_0 : i32, i32
  }
  func.func @transform_9(%arg0: i32) -> (i32, i32) {
    %c0_i32 = arith.constant 0 : i32
    %c0_i32_0 = arith.constant 0 : i32
    %c0_i32_1 = arith.constant 0 : i32
    return %c0_i32, %c0_i32_0 : i32, i32
  }
  func.func @transform_10(%arg0: i32) -> (i32, i32) {
    %c0_i32 = arith.constant 0 : i32
    %c0_i32_0 = arith.constant 0 : i32
    %c0_i32_1 = arith.constant 0 : i32
    return %c0_i32, %c0_i32_0 : i32, i32
  }
  func.func @transform_11(%arg0: i32) -> (i32, i32) {
    %c0_i32 = arith.constant 0 : i32
    %c0_i32_0 = arith.constant 0 : i32
    %c0_i32_1 = arith.constant 0 : i32
    return %c0_i32, %c0_i32_0 : i32, i32
  }
  func.func @transform_12(%arg0: i32) -> (i32, i32) {
    %c0_i32 = arith.constant 0 : i32
    %c0_i32_0 = arith.constant 0 : i32
    %c0_i32_1 = arith.constant 0 : i32
    return %c0_i32, %c0_i32_0 : i32, i32
  }
  func.func @transform_13(%arg0: i32) -> (i32, i32) {
    %c0_i32 = arith.constant 0 : i32
    %c0_i32_0 = arith.constant 0 : i32
    return %c0_i32, %arg0 : i32, i32
  }
}

</mosaic_0001>

<llo_original>
// kernel: tpu_custom_call.1
$region0: #{tpu_custom_call.1}
  #allocation0 [shape = 'u32[]', space=smem, size = 0x4, offset = 0x4, fixed_abs, tag = 'smem constant byte address 0x4 - core index']
  #allocation1 [shape = 'u32[144,128]{1,0:T(1,128)}', space=vmem, size = 0x12000, scoped, tag = 'internal scratch']
  #allocation2 [shape = 'f32[1,1]{1,0:T(1,128)S(1)}', space=vmem, size = 0x200, scoped, tag = 'scoped memory for tpu_custom_call.1']
  %s0 = inlined_call_operand.vmem [shape: s32[1,256], index: 0, kind: input, shape index: {}]
  %s1 = inlined_call_operand.vmem [shape: s32[1,256], index: 1, kind: input, shape index: {}]
  %s2 = inlined_call_operand.vmem [shape: f32[256,64], index: 2, kind: input, shape index: {}]
  %s3 = inlined_call_operand.vmem [shape: f32[128,256], index: 3, kind: input, shape index: {}]
  %s4 = inlined_call_operand.vmem [shape: f32[128,1], index: 4, kind: input, shape index: {}]
  %s5 = inlined_call_operand.vmem [shape: f32[64,128], index: 5, kind: input, shape index: {}]
  %s6 = inlined_call_operand.vmem [shape: f32[64,1], index: 6, kind: input, shape index: {}]
  %s7 = inlined_call_operand.vmem [shape: f32[32,64], index: 7, kind: input, shape index: {}]
  %s8 = inlined_call_operand.vmem [shape: f32[32,1], index: 8, kind: input, shape index: {}]
  %s9 = inlined_call_operand.vmem [shape: f32[1,32], index: 9, kind: input, shape index: {}]
  %s10 = inlined_call_operand.vmem [shape: f32[1,32], index: 10, kind: input, shape index: {}]
  %s11 = inlined_call_operand.vmem [shape: f32[1,32], index: 11, kind: input, shape index: {}]
  %s12 = inlined_call_operand.<no memory space> [shape: f32[1,1], index: 12, kind: input, shape index: {}]
  %s13 = inlined_call_operand.hbm [shape: f32[1,256], index: 13, kind: output, shape index: {}]
  %s14 = sld [smem:[#allocation0]]
  $region85: #{tpu_custom_call.1} parent=0
    _
  %s16 = ssub.s32 1, %s14
  %s17 = scalar_select 0, %s16, %s14
  %v18 = vstv %s12
  %19 = vst [vmem:[#allocation2] sm:$0x1] %v18
  $region1: #{tpu_custom_call.1} parent=0
    #allocation3 [shape = 'u8[1024]{0}', space=vmem, size = 0x400, scoped, tag = 'output window, operand 0']
    #allocation4 [shape = 's32[2]{0}', space=sflag, size = 0x8, scoped, tag = 'scoped memory for tpu_custom_call.1']
    %20 = vsyncpa [#allocation4], 0
    %s21 = scalar_lea.sflag [#allocation4], 1
    %22 = vsyncpa %s21, 0
    loop: start=0, step=1, limit=4
    $region2: #{tpu_custom_call.1} parent=1 // loop_pre_header
      _
    $region3: #{tpu_custom_call.1} parent=1 // loop_header
      %s24 = sphi 0, %s28
      %p25 = scmp.ge.s32.totalorder %s24, 4
      %s34 = sphi 0, %s36
      %s37 = sphi 0, %s34
      %s38 = sphi 0, %s37
      %s54 = sphi 0, %s38
      %s60 = sphi 0, %s62
      %s63 = sphi 0, %s60
      %s64 = sphi 0, %s63
      %s80 = sphi 0, %s64
      %s84 = sphi 0, %s84
      %s86 = sphi 0, %s84
      %s87 = sphi 0, %s86
      %s101 = sphi 0, %s87
      %s105 = sphi 0, %s105
      %s107 = sphi 0, %s105
      %s108 = sphi 0, %s107
      %s122 = sphi 0, %s108
      %s126 = sphi 0, %s126
      %s128 = sphi 0, %s126
      %s129 = sphi 0, %s128
      %s143 = sphi 0, %s129
      %s147 = sphi 0, %s147
      %s149 = sphi 0, %s147
      %s150 = sphi 0, %s149
      %s164 = sphi 0, %s150
      %s168 = sphi 0, %s168
      %s170 = sphi 0, %s168
      %s171 = sphi 0, %s170
      %s185 = sphi 0, %s171
      %s189 = sphi 0, %s189
      %s191 = sphi 0, %s189
      %s192 = sphi 0, %s191
      %s206 = sphi 0, %s192
      %s210 = sphi 0, %s210
      %s212 = sphi 0, %s210
      %s213 = sphi 0, %s212
      %s227 = sphi 0, %s213
      %s231 = sphi 0, %s231
      %s233 = sphi 0, %s231
      %s234 = sphi 0, %s233
      %s248 = sphi 0, %s234
      %s252 = sphi 0, %s252
      %s254 = sphi 0, %s252
      %s255 = sphi 0, %s254
      %s269 = sphi 0, %s255
      %s273 = sphi 0, %s273
      %s275 = sphi 0, %s273
      %s276 = sphi 0, %s275
      %s290 = sphi 0, %s276
      %s294 = sphi 0, %s294
      %s296 = sphi 0, %s294
      %s297 = sphi 0, %s296
      %s311 = sphi 0, %s297
      %s317 = sphi 0, %s319
      %s320 = sphi 0, %s317
      %s321 = sphi 0, %s320
      %s337 = sphi 0, %s321
    $region4: #{tpu_custom_call.1} parent=1 // loop_header_branch
      %27 = sbr.rel (%p25) target = $region8
    $region5: #{tpu_custom_call.1} parent=1 // loop_body
      %s29 = ssub.s32 %s24, 1
      %s30 = ssub.s32 %s24, 2
      %s31 = sadd.s32 %s24, 1
      %s32 = ssub.s32 %s24, %s31
      %p33 = scmp.eq.s32.totalorder %s32, 0
      %s35 = sadd.s32 %s34, 1
      %s36 = scalar_select %p33, %s34, %s35
      %p39 = pneg %p33
      %p40 = scmp.eq.s32.totalorder %s24, 1
      %p41 = por %p39, %p40
      %p42 = scmp.ne.s32.totalorder %s34, %s37
      %p43 = scmp.eq.s32.totalorder %s24, 0
      %p44 = por %p42, %p43
      %p45 = scmp.ne.s32.totalorder %s34, %s37
      %p46 = scmp.eq.s32.totalorder %s29, 1
      %p47 = por %p45, %p46
      %p48 = scmp.ne.s32.totalorder %s37, %s38
      %p49 = scmp.eq.s32.totalorder %s29, 0
      %p50 = por %p48, %p49
      %p51 = scmp.ne.s32.totalorder %s37, %s38
      %p52 = scmp.eq.s32.totalorder %s30, 1
      %p53 = por %p51, %p52
      %p55 = scmp.ne.s32.totalorder %s38, %s54
      %p56 = scmp.eq.s32.totalorder %s30, 0
      %p57 = por %p55, %p56
      %s58 = ssub.s32 %s24, %s31
      %p59 = scmp.eq.s32.totalorder %s58, 0
      %s61 = sadd.s32 %s60, 1
      %s62 = scalar_select %p59, %s60, %s61
      %p65 = pneg %p59
      %p66 = scmp.eq.s32.totalorder %s24, 1
      %p67 = por %p65, %p66
      %p68 = scmp.ne.s32.totalorder %s60, %s63
      %p69 = scmp.eq.s32.totalorder %s24, 0
      %p70 = por %p68, %p69
      %p71 = scmp.ne.s32.totalorder %s60, %s63
      %p72 = scmp.eq.s32.totalorder %s29, 1
      %p73 = por %p71, %p72
      %p74 = scmp.ne.s32.totalorder %s63, %s64
      %p75 = scmp.eq.s32.totalorder %s29, 0
      %p76 = por %p74, %p75
      %p77 = scmp.ne.s32.totalorder %s63, %s64
      %p78 = scmp.eq.s32.totalorder %s30, 1
      %p79 = por %p77, %p78
      %p81 = scmp.ne.s32.totalorder %s64, %s80
      %p82 = scmp.eq.s32.totalorder %s30, 0
      %p83 = por %p81, %p82
      %s85 = sadd.s32 %s84, 1
      %p88 = scmp.eq.s32.totalorder %s24, 1
      %p89 = scmp.ne.s32.totalorder %s84, %s86
      %p90 = scmp.eq.s32.totalorder %s24, 0
      %p91 = por %p89, %p90
      %p92 = scmp.ne.s32.totalorder %s84, %s86
      %p93 = scmp.eq.s32.totalorder %s29, 1
      %p94 = por %p92, %p93
      %p95 = scmp.ne.s32.totalorder %s86, %s87
      %p96 = scmp.eq.s32.totalorder %s29, 0
      %p97 = por %p95, %p96
      %p98 = scmp.ne.s32.totalorder %s86, %s87
      %p99 = scmp.eq.s32.totalorder %s30, 1
      %p100 = por %p98, %p99
      %p102 = scmp.ne.s32.totalorder %s87, %s101
      %p103 = scmp.eq.s32.totalorder %s30, 0
      %p104 = por %p102, %p103
      %s106 = sadd.s32 %s105, 1
      %p109 = scmp.eq.s32.totalorder %s24, 1
      %p110 = scmp.ne.s32.totalorder %s105, %s107
      %p111 = scmp.eq.s32.totalorder %s24, 0
      %p112 = por %p110, %p111
      %p113 = scmp.ne.s32.totalorder %s105, %s107
      %p114 = scmp.eq.s32.totalorder %s29, 1
      %p115 = por %p113, %p114
      %p116 = scmp.ne.s32.totalorder %s107, %s108
      %p117 = scmp.eq.s32.totalorder %s29, 0
      %p118 = por %p116, %p117
      %p119 = scmp.ne.s32.totalorder %s107, %s108
      %p120 = scmp.eq.s32.totalorder %s30, 1
      %p121 = por %p119, %p120
      %p123 = scmp.ne.s32.totalorder %s108, %s122
      %p124 = scmp.eq.s32.totalorder %s30, 0
      %p125 = por %p123, %p124
      %s127 = sadd.s32 %s126, 1
      %p130 = scmp.eq.s32.totalorder %s24, 1
      %p131 = scmp.ne.s32.totalorder %s126, %s128
      %p132 = scmp.eq.s32.totalorder %s24, 0
      %p133 = por %p131, %p132
      %p134 = scmp.ne.s32.totalorder %s126, %s128
      %p135 = scmp.eq.s32.totalorder %s29, 1
      %p136 = por %p134, %p135
      %p137 = scmp.ne.s32.totalorder %s128, %s129
      %p138 = scmp.eq.s32.totalorder %s29, 0
      %p139 = por %p137, %p138
      %p140 = scmp.ne.s32.totalorder %s128, %s129
      %p141 = scmp.eq.s32.totalorder %s30, 1
      %p142 = por %p140, %p141
      %p144 = scmp.ne.s32.totalorder %s129, %s143
      %p145 = scmp.eq.s32.totalorder %s30, 0
      %p146 = por %p144, %p145
      %s148 = sadd.s32 %s147, 1
      %p151 = scmp.eq.s32.totalorder %s24, 1
      %p152 = scmp.ne.s32.totalorder %s147, %s149
      %p153 = scmp.eq.s32.totalorder %s24, 0
      %p154 = por %p152, %p153
      %p155 = scmp.ne.s32.totalorder %s147, %s149
      %p156 = scmp.eq.s32.totalorder %s29, 1
      %p157 = por %p155, %p156
      %p158 = scmp.ne.s32.totalorder %s149, %s150
      %p159 = scmp.eq.s32.totalorder %s29, 0
      %p160 = por %p158, %p159
      %p161 = scmp.ne.s32.totalorder %s149, %s150
      %p162 = scmp.eq.s32.totalorder %s30, 1
      %p163 = por %p161, %p162
      %p165 = scmp.ne.s32.totalorder %s150, %s164
      %p166 = scmp.eq.s32.totalorder %s30, 0
      %p167 = por %p165, %p166
      %s169 = sadd.s32 %s168, 1
      %p172 = scmp.eq.s32.totalorder %s24, 1
      %p173 = scmp.ne.s32.totalorder %s168, %s170
      %p174 = scmp.eq.s32.totalorder %s24, 0
      %p175 = por %p173, %p174
      %p176 = scmp.ne.s32.totalorder %s168, %s170
      %p177 = scmp.eq.s32.totalorder %s29, 1
      %p178 = por %p176, %p177
      %p179 = scmp.ne.s32.totalorder %s170, %s171
      %p180 = scmp.eq.s32.totalorder %s29, 0
      %p181 = por %p179, %p180
      %p182 = scmp.ne.s32.totalorder %s170, %s171
      %p183 = scmp.eq.s32.totalorder %s30, 1
      %p184 = por %p182, %p183
      %p186 = scmp.ne.s32.totalorder %s171, %s185
      %p187 = scmp.eq.s32.totalorder %s30, 0
      %p188 = por %p186, %p187
      %s190 = sadd.s32 %s189, 1
      %p193 = scmp.eq.s32.totalorder %s24, 1
      %p194 = scmp.ne.s32.totalorder %s189, %s191
      %p195 = scmp.eq.s32.totalorder %s24, 0
      %p196 = por %p194, %p195
      %p197 = scmp.ne.s32.totalorder %s189, %s191
      %p198 = scmp.eq.s32.totalorder %s29, 1
      %p199 = por %p197, %p198
      %p200 = scmp.ne.s32.totalorder %s191, %s192
      %p201 = scmp.eq.s32.totalorder %s29, 0
      %p202 = por %p200, %p201
      %p203 = scmp.ne.s32.totalorder %s191, %s192
      %p204 = scmp.eq.s32.totalorder %s30, 1
      %p205 = por %p203, %p204
      %p207 = scmp.ne.s32.totalorder %s192, %s206
      %p208 = scmp.eq.s32.totalorder %s30, 0
      %p209 = por %p207, %p208
      %s211 = sadd.s32 %s210, 1
      %p214 = scmp.eq.s32.totalorder %s24, 1
      %p215 = scmp.ne.s32.totalorder %s210, %s212
      %p216 = scmp.eq.s32.totalorder %s24, 0
      %p217 = por %p215, %p216
      %p218 = scmp.ne.s32.totalorder %s210, %s212
      %p219 = scmp.eq.s32.totalorder %s29, 1
      %p220 = por %p218, %p219
      %p221 = scmp.ne.s32.totalorder %s212, %s213
      %p222 = scmp.eq.s32.totalorder %s29, 0
      %p223 = por %p221, %p222
      %p224 = scmp.ne.s32.totalorder %s212, %s213
      %p225 = scmp.eq.s32.totalorder %s30, 1
      %p226 = por %p224, %p225
      %p228 = scmp.ne.s32.totalorder %s213, %s227
      %p229 = scmp.eq.s32.totalorder %s30, 0
      %p230 = por %p228, %p229
      %s232 = sadd.s32 %s231, 1
      %p235 = scmp.eq.s32.totalorder %s24, 1
      %p236 = scmp.ne.s32.totalorder %s231, %s233
      %p237 = scmp.eq.s32.totalorder %s24, 0
      %p238 = por %p236, %p237
      %p239 = scmp.ne.s32.totalorder %s231, %s233
      %p240 = scmp.eq.s32.totalorder %s29, 1
      %p241 = por %p239, %p240
      %p242 = scmp.ne.s32.totalorder %s233, %s234
      %p243 = scmp.eq.s32.totalorder %s29, 0
      %p244 = por %p242, %p243
      %p245 = scmp.ne.s32.totalorder %s233, %s234
      %p246 = scmp.eq.s32.totalorder %s30, 1
      %p247 = por %p245, %p246
      %p249 = scmp.ne.s32.totalorder %s234, %s248
      %p250 = scmp.eq.s32.totalorder %s30, 0
      %p251 = por %p249, %p250
      %s253 = sadd.s32 %s252, 1
      %p256 = scmp.eq.s32.totalorder %s24, 1
      %p257 = scmp.ne.s32.totalorder %s252, %s254
      %p258 = scmp.eq.s32.totalorder %s24, 0
      %p259 = por %p257, %p258
      %p260 = scmp.ne.s32.totalorder %s252, %s254
      %p261 = scmp.eq.s32.totalorder %s29, 1
      %p262 = por %p260, %p261
      %p263 = scmp.ne.s32.totalorder %s254, %s255
      %p264 = scmp.eq.s32.totalorder %s29, 0
      %p265 = por %p263, %p264
      %p266 = scmp.ne.s32.totalorder %s254, %s255
      %p267 = scmp.eq.s32.totalorder %s30, 1
      %p268 = por %p266, %p267
      %p270 = scmp.ne.s32.totalorder %s255, %s269
      %p271 = scmp.eq.s32.totalorder %s30, 0
      %p272 = por %p270, %p271
      %s274 = sadd.s32 %s273, 1
      %p277 = scmp.eq.s32.totalorder %s24, 1
      %p278 = scmp.ne.s32.totalorder %s273, %s275
      %p279 = scmp.eq.s32.totalorder %s24, 0
      %p280 = por %p278, %p279
      %p281 = scmp.ne.s32.totalorder %s273, %s275
      %p282 = scmp.eq.s32.totalorder %s29, 1
      %p283 = por %p281, %p282
      %p284 = scmp.ne.s32.totalorder %s275, %s276
      %p285 = scmp.eq.s32.totalorder %s29, 0
      %p286 = por %p284, %p285
      %p287 = scmp.ne.s32.totalorder %s275, %s276
      %p288 = scmp.eq.s32.totalorder %s30, 1
      %p289 = por %p287, %p288
      %p291 = scmp.ne.s32.totalorder %s276, %s290
      %p292 = scmp.eq.s32.totalorder %s30, 0
      %p293 = por %p291, %p292
      %s295 = sadd.s32 %s294, 1
      %p298 = scmp.eq.s32.totalorder %s24, 1
      %p299 = scmp.ne.s32.totalorder %s294, %s296
      %p300 = scmp.eq.s32.totalorder %s24, 0
      %p301 = por %p299, %p300
      %p302 = scmp.ne.s32.totalorder %s294, %s296
      %p303 = scmp.eq.s32.totalorder %s29, 1
      %p304 = por %p302, %p303
      %p305 = scmp.ne.s32.totalorder %s296, %s297
      %p306 = scmp.eq.s32.totalorder %s29, 0
      %p307 = por %p305, %p306
      %p308 = scmp.ne.s32.totalorder %s296, %s297
      %p309 = scmp.eq.s32.totalorder %s30, 1
      %p310 = por %p308, %p309
      %p312 = scmp.ne.s32.totalorder %s297, %s311
      %p313 = scmp.eq.s32.totalorder %s30, 0
      %p314 = por %p312, %p313
      %s315 = ssub.s32 %s24, %s31
      %p316 = scmp.eq.s32.totalorder %s315, 0
      %s318 = sadd.s32 %s317, 1
      %s319 = scalar_select %p316, %s317, %s318
      %p322 = pneg %p316
      %p323 = scmp.eq.s32.totalorder %s24, 1
      %p324 = por %p322, %p323
      %p325 = scmp.ne.s32.totalorder %s317, %s320
      %p326 = scmp.eq.s32.totalorder %s24, 0
      %p327 = por %p325, %p326
      %p328 = scmp.ne.s32.totalorder %s317, %s320
      %p329 = scmp.eq.s32.totalorder %s29, 1
      %p330 = por %p328, %p329
      %p331 = scmp.ne.s32.totalorder %s320, %s321
      %p332 = scmp.eq.s32.totalorder %s29, 0
      %p333 = por %p331, %p332
      %p334 = scmp.ne.s32.totalorder %s320, %s321
      %p335 = scmp.eq.s32.totalorder %s30, 1
      %p336 = por %p334, %p335
      %p338 = scmp.ne.s32.totalorder %s321, %s337
      %p339 = scmp.eq.s32.totalorder %s30, 0
      %p340 = por %p338, %p339
      %p341 = scmp.le.s32.totalorder 1, %s24
      %p342 = scmp.lt.s32.totalorder %s24, 3
      %p343 = pnand %p341, %p342
      %p344 = pneg %p343
      // Predicated region
      $region9: #{tpu_custom_call.1} parent=5 // pred_check
        _
      $region10: #{tpu_custom_call.1} parent=5 // pred_check_branch
        %346 = sbr.rel (%p343) target = $region12
      $region11: #{tpu_custom_call.1} parent=5 // pred_region
        %s347 = ssub.s32 %s24, 1
        // Predicated region
        $region13: #{tpu_custom_call.1} parent=11 // pred_check
          %p348 = pneg %p97
        $region14: #{tpu_custom_call.1} parent=11 // pred_check_branch
          %350 = sbr.rel (%p348) target = $region16
        $region15: #{tpu_custom_call.1} parent=11 // pred_region
          _
        $region16: #{tpu_custom_call.1} parent=11 // pred_fallthru
          _
        // Predicated region
        $region17: #{tpu_custom_call.1} parent=11 // pred_check
          %p351 = pneg %p118
        $region18: #{tpu_custom_call.1} parent=11 // pred_check_branch
          %353 = sbr.rel (%p351) target = $region20
        $region19: #{tpu_custom_call.1} parent=11 // pred_region
          _
        $region20: #{tpu_custom_call.1} parent=11 // pred_fallthru
          _
        // Predicated region
        $region21: #{tpu_custom_call.1} parent=11 // pred_check
          %p354 = pneg %p139
        $region22: #{tpu_custom_call.1} parent=11 // pred_check_branch
          %356 = sbr.rel (%p354) target = $region24
        $region23: #{tpu_custom_call.1} parent=11 // pred_region
          _
        $region24: #{tpu_custom_call.1} parent=11 // pred_fallthru
          _
        // Predicated region
        $region25: #{tpu_custom_call.1} parent=11 // pred_check
          %p357 = pneg %p160
        $region26: #{tpu_custom_call.1} parent=11 // pred_check_branch
          %359 = sbr.rel (%p357) target = $region28
        $region27: #{tpu_custom_call.1} parent=11 // pred_region
          _
        $region28: #{tpu_custom_call.1} parent=11 // pred_fallthru
          _
        // Predicated region
        $region29: #{tpu_custom_call.1} parent=11 // pred_check
          %p360 = pneg %p181
        $region30: #{tpu_custom_call.1} parent=11 // pred_check_branch
          %362 = sbr.rel (%p360) target = $region32
        $region31: #{tpu_custom_call.1} parent=11 // pred_region
          _
        $region32: #{tpu_custom_call.1} parent=11 // pred_fallthru
          _
        // Predicated region
        $region33: #{tpu_custom_call.1} parent=11 // pred_check
          %p363 = pneg %p202
        $region34: #{tpu_custom_call.1} parent=11 // pred_check_branch
          %365 = sbr.rel (%p363) target = $region36
        $region35: #{tpu_custom_call.1} parent=11 // pred_region
          _
        $region36: #{tpu_custom_call.1} parent=11 // pred_fallthru
          _
        // Predicated region
        $region37: #{tpu_custom_call.1} parent=11 // pred_check
          %p366 = pneg %p223
        $region38: #{tpu_custom_call.1} parent=11 // pred_check_branch
          %368 = sbr.rel (%p366) target = $region40
        $region39: #{tpu_custom_call.1} parent=11 // pred_region
          _
        $region40: #{tpu_custom_call.1} parent=11 // pred_fallthru
          _
        // Predicated region
        $region41: #{tpu_custom_call.1} parent=11 // pred_check
          %p369 = pneg %p244
        $region42: #{tpu_custom_call.1} parent=11 // pred_check_branch
          %371 = sbr.rel (%p369) target = $region44
        $region43: #{tpu_custom_call.1} parent=11 // pred_region
          _
        $region44: #{tpu_custom_call.1} parent=11 // pred_fallthru
          _
        // Predicated region
        $region45: #{tpu_custom_call.1} parent=11 // pred_check
          %p372 = pneg %p265
        $region46: #{tpu_custom_call.1} parent=11 // pred_check_branch
          %374 = sbr.rel (%p372) target = $region48
        $region47: #{tpu_custom_call.1} parent=11 // pred_region
          _
        $region48: #{tpu_custom_call.1} parent=11 // pred_fallthru
          _
        // Predicated region
        $region49: #{tpu_custom_call.1} parent=11 // pred_check
          %p375 = pneg %p286
        $region50: #{tpu_custom_call.1} parent=11 // pred_check_branch
          %377 = sbr.rel (%p375) target = $region52
        $region51: #{tpu_custom_call.1} parent=11 // pred_region
          _
        $region52: #{tpu_custom_call.1} parent=11 // pred_fallthru
          _
        // Predicated region
        $region53: #{tpu_custom_call.1} parent=11 // pred_check
          %p378 = pneg %p307
        $region54: #{tpu_custom_call.1} parent=11 // pred_check_branch
          %380 = sbr.rel (%p378) target = $region56
        $region55: #{tpu_custom_call.1} parent=11 // pred_region
          _
        $region56: #{tpu_custom_call.1} parent=11 // pred_fallthru
          _
      $region12: #{tpu_custom_call.1} parent=5 // pred_fallthru
        _
      %p381 = scmp.lt.s32.totalorder %s24, 2
      // Predicated region
      $region57: #{tpu_custom_call.1} parent=5 // pred_check
        %p382 = pneg %p381
      $region58: #{tpu_custom_call.1} parent=5 // pred_check_branch
        %384 = sbr.rel (%p382) target = $region60
      $region59: #{tpu_custom_call.1} parent=5 // pred_region
        // Predicated region
        $region61: #{tpu_custom_call.1} parent=59 // pred_check
          %p385 = pneg %p44
        $region62: #{tpu_custom_call.1} parent=59 // pred_check_branch
          %387 = sbr.rel (%p385) target = $region64
        $region63: #{tpu_custom_call.1} parent=59 // pred_region
          %p388 = scmp.lt.s32.totalorder %s24, 1
          %s389 = scalar_select %p388, %s24, 1
          %s390 = scalar_lea.vmem %s0, %s389
        $region64: #{tpu_custom_call.1} parent=59 // pred_fallthru
          _
        // Predicated region
        $region65: #{tpu_custom_call.1} parent=59 // pred_check
          %p391 = pneg %p70
        $region66: #{tpu_custom_call.1} parent=59 // pred_check_branch
          %393 = sbr.rel (%p391) target = $region68
        $region67: #{tpu_custom_call.1} parent=59 // pred_region
          %p394 = scmp.lt.s32.totalorder %s24, 1
          %s395 = scalar_select %p394, %s24, 1
          %s396 = scalar_lea.vmem %s1, %s395
        $region68: #{tpu_custom_call.1} parent=59 // pred_fallthru
          _
      $region60: #{tpu_custom_call.1} parent=5 // pred_fallthru
        _
      %p397 = scmp.le.s32.totalorder 1, %s24
      %p398 = scmp.lt.s32.totalorder %s24, 3
      %p399 = pnand %p397, %p398
      %p400 = pneg %p399
      // Predicated region
      $region69: #{tpu_custom_call.1} parent=5 // pred_check
        _
      $region70: #{tpu_custom_call.1} parent=5 // pred_check_branch
        %402 = sbr.rel (%p399) target = $region72
      $region71: #{tpu_custom_call.1} parent=5 // pred_region
        %s403 = ssub.s32 %s24, 1
        %p404 = scmp.lt.s32.totalorder %s29, 1
        %s405 = scalar_select %p404, %s29, 1
        %s406 = scalar_lea.vmem %s0, %s405
        %p407 = pneg %p50
        %p408 = pneg %p47
        %p409 = scmp.lt.s32.totalorder %s29, 1
        %s410 = scalar_select %p409, %s29, 1
        %s411 = scalar_lea.vmem %s1, %s410
        %p412 = pneg %p76
        %p413 = pneg %p73
        %p414 = pneg %p97
        %p415 = pneg %p94
        %p416 = pneg %p118
        %p417 = pneg %p115
        %p418 = pneg %p139
        %p419 = pneg %p136
        %p420 = pneg %p160
        %p421 = pneg %p157
        %p422 = pneg %p181
        %p423 = pneg %p178
        %p424 = pneg %p202
        %p425 = pneg %p199
        %p426 = pneg %p223
        %p427 = pneg %p220
        %p428 = pneg %p244
        %p429 = pneg %p241
        %p430 = pneg %p265
        %p431 = pneg %p262
        %p432 = pneg %p286
        %p433 = pneg %p283
        %p434 = pneg %p307
        %p435 = pneg %p304
        %p436 = pneg %p333
        %p437 = pneg %p330
        %s438 = sand.u32 %s320, 1
        %s439 = scalar_lea.sflag [#allocation4], %s438
        %s440 = sand.u32 %s320, 1
        %s441 = scalar_lea.vmem [#allocation3], %s440
        %p442 = scmp.lt.s32.totalorder %s29, 1
        %s443 = scalar_select %p442, %s29, 1
        %s444 = scalar_lea.vmem %s0, %s443
        %p445 = scmp.lt.s32.totalorder %s29, 1
        %s446 = scalar_select %p445, %s29, 1
        %s447 = scalar_lea.vmem %s1, %s446
        %v448 = vld [vmem:[%s3] sm:$0xff]
        %v449 = vld [vmem:[%s3 + $0x8] sm:$0xff]
        %v450 = vld [vmem:[%s3 + $0x10] sm:$0xff]
        %v451 = vld [vmem:[%s3 + $0x18] sm:$0xff]
        %v452 = vld [vmem:[%s3 + $0x20] sm:$0xff]
        %v453 = vld [vmem:[%s3 + $0x28] sm:$0xff]
        %v454 = vld [vmem:[%s3 + $0x30] sm:$0xff]
        %v455 = vld [vmem:[%s3 + $0x38] sm:$0xff]
        %v456 = vld [vmem:[%s3 + $0x40] sm:$0xff]
        %v457 = vld [vmem:[%s3 + $0x48] sm:$0xff]
        %v458 = vld [vmem:[%s3 + $0x50] sm:$0xff]
        %v459 = vld [vmem:[%s3 + $0x58] sm:$0xff]
        %v460 = vld [vmem:[%s3 + $0x60] sm:$0xff]
        %v461 = vld [vmem:[%s3 + $0x68] sm:$0xff]
        %v462 = vld [vmem:[%s3 + $0x70] sm:$0xff]
        %v463 = vld [vmem:[%s3 + $0x78] sm:$0xff]
        %v464 = vld [vmem:[%s3 + $0x80] sm:$0xff]
        %v465 = vld [vmem:[%s3 + $0x88] sm:$0xff]
        %v466 = vld [vmem:[%s3 + $0x90] sm:$0xff]
        %v467 = vld [vmem:[%s3 + $0x98] sm:$0xff]
        %v468 = vld [vmem:[%s3 + $0xa0] sm:$0xff]
        %v469 = vld [vmem:[%s3 + $0xa8] sm:$0xff]
        %v470 = vld [vmem:[%s3 + $0xb0] sm:$0xff]
        %v471 = vld [vmem:[%s3 + $0xb8] sm:$0xff]
        %v472 = vld [vmem:[%s3 + $0xc0] sm:$0xff]
        %v473 = vld [vmem:[%s3 + $0xc8] sm:$0xff]
        %v474 = vld [vmem:[%s3 + $0xd0] sm:$0xff]
        %v475 = vld [vmem:[%s3 + $0xd8] sm:$0xff]
        %v476 = vld [vmem:[%s3 + $0xe0] sm:$0xff]
        %v477 = vld [vmem:[%s3 + $0xe8] sm:$0xff]
        %v478 = vld [vmem:[%s3 + $0xf0] sm:$0xff]
        %v479 = vld [vmem:[%s3 + $0xf8] sm:$0xff]
        %v480 = vld [vmem:[%s2] sm:$0xff]
        %v481 = vld [vmem:[%s2 + $0x8] sm:$0xff]
        %v482 = vld [vmem:[%s2 + $0x10] sm:$0xff]
        %v483 = vld [vmem:[%s2 + $0x18] sm:$0xff]
        %v484 = vld [vmem:[%s2 + $0x20] sm:$0xff]
        %v485 = vld [vmem:[%s2 + $0x28] sm:$0xff]
        %v486 = vld [vmem:[%s2 + $0x30] sm:$0xff]
        %v487 = vld [vmem:[%s2 + $0x38] sm:$0xff]
        %v488 = vld [vmem:[%s2 + $0x40] sm:$0xff]
        %v489 = vld [vmem:[%s2 + $0x48] sm:$0xff]
        %v490 = vld [vmem:[%s2 + $0x50] sm:$0xff]
        %v491 = vld [vmem:[%s2 + $0x58] sm:$0xff]
        %v492 = vld [vmem:[%s2 + $0x60] sm:$0xff]
        %v493 = vld [vmem:[%s2 + $0x68] sm:$0xff]
        %v494 = vld [vmem:[%s2 + $0x70] sm:$0xff]
        %v495 = vld [vmem:[%s2 + $0x78] sm:$0xff]
        %v496 = vld [vmem:[%s2 + $0x80] sm:$0xff]
        %v497 = vld [vmem:[%s2 + $0x88] sm:$0xff]
        %v498 = vld [vmem:[%s2 + $0x90] sm:$0xff]
        %v499 = vld [vmem:[%s2 + $0x98] sm:$0xff]
        %v500 = vld [vmem:[%s2 + $0xa0] sm:$0xff]
        %v501 = vld [vmem:[%s2 + $0xa8] sm:$0xff]
        %v502 = vld [vmem:[%s2 + $0xb0] sm:$0xff]
        %v503 = vld [vmem:[%s2 + $0xb8] sm:$0xff]
        %v504 = vld [vmem:[%s2 + $0xc0] sm:$0xff]
        %v505 = vld [vmem:[%s2 + $0xc8] sm:$0xff]
        %v506 = vld [vmem:[%s2 + $0xd0] sm:$0xff]
        %v507 = vld [vmem:[%s2 + $0xd8] sm:$0xff]
        %v508 = vld [vmem:[%s2 + $0xe0] sm:$0xff]
        %v509 = vld [vmem:[%s2 + $0xe8] sm:$0xff]
        %v510 = vld [vmem:[%s2 + $0xf0] sm:$0xff]
        %v511 = vld [vmem:[%s2 + $0xf8] sm:$0xff]
        %v512 = vld [vmem:[%s4] sm:$0xff]
        %v513 = vld [vmem:[%s4 + $0x8] sm:$0xff]
        %v514 = vld [vmem:[%s4 + $0x10] sm:$0xff]
        %v515 = vld [vmem:[%s4 + $0x18] sm:$0xff]
        %v516 = vld [vmem:[%s4 + $0x20] sm:$0xff]
        %v517 = vld [vmem:[%s4 + $0x28] sm:$0xff]
        %v518 = vld [vmem:[%s4 + $0x30] sm:$0xff]
        %v519 = vld [vmem:[%s4 + $0x38] sm:$0xff]
        %v520 = vld [vmem:[%s4 + $0x40] sm:$0xff]
        %v521 = vld [vmem:[%s4 + $0x48] sm:$0xff]
        %v522 = vld [vmem:[%s4 + $0x50] sm:$0xff]
        %v523 = vld [vmem:[%s4 + $0x58] sm:$0xff]
        %v524 = vld [vmem:[%s4 + $0x60] sm:$0xff]
        %v525 = vld [vmem:[%s4 + $0x68] sm:$0xff]
        %v526 = vld [vmem:[%s4 + $0x70] sm:$0xff]
        %v527 = vld [vmem:[%s4 + $0x78] sm:$0xff]
        %529 = vset.pattern.permute.xlu0 0
        %530 = vperm.xlu0 %529, %v512
        %v531 = vpop.permute.xlu0 %530
        %534 = vset.pattern.permute.xlu0 0
        %535 = vperm.xlu0 %534, %v513
        %v536 = vpop.permute.xlu0 %535
        %539 = vset.pattern.permute.xlu0 0
        %540 = vperm.xlu0 %539, %v514
        %v541 = vpop.permute.xlu0 %540
        %544 = vset.pattern.permute.xlu0 0
        %545 = vperm.xlu0 %544, %v515
        %v546 = vpop.permute.xlu0 %545
        %549 = vset.pattern.permute.xlu0 0
        %550 = vperm.xlu0 %549, %v516
        %v551 = vpop.permute.xlu0 %550
        %554 = vset.pattern.permute.xlu0 0
        %555 = vperm.xlu0 %554, %v517
        %v556 = vpop.permute.xlu0 %555
        %559 = vset.pattern.permute.xlu0 0
        %560 = vperm.xlu0 %559, %v518
        %v561 = vpop.permute.xlu0 %560
        %564 = vset.pattern.permute.xlu0 0
        %565 = vperm.xlu0 %564, %v519
        %v566 = vpop.permute.xlu0 %565
        %569 = vset.pattern.permute.xlu0 0
        %570 = vperm.xlu0 %569, %v520
        %v571 = vpop.permute.xlu0 %570
        %574 = vset.pattern.permute.xlu0 0
        %575 = vperm.xlu0 %574, %v521
        %v576 = vpop.permute.xlu0 %575
        %579 = vset.pattern.permute.xlu0 0
        %580 = vperm.xlu0 %579, %v522
        %v581 = vpop.permute.xlu0 %580
        %584 = vset.pattern.permute.xlu0 0
        %585 = vperm.xlu0 %584, %v523
        %v586 = vpop.permute.xlu0 %585
        %589 = vset.pattern.permute.xlu0 0
        %590 = vperm.xlu0 %589, %v524
        %v591 = vpop.permute.xlu0 %590
        %594 = vset.pattern.permute.xlu0 0
        %595 = vperm.xlu0 %594, %v525
        %v596 = vpop.permute.xlu0 %595
        %599 = vset.pattern.permute.xlu0 0
        %600 = vperm.xlu0 %599, %v526
        %v601 = vpop.permute.xlu0 %600
        %604 = vset.pattern.permute.xlu0 0
        %605 = vperm.xlu0 %604, %v527
        %v606 = vpop.permute.xlu0 %605
        %608 = vmatprep.subr.mxu0 0.0
        %609 = vmatpush1.msra.mxu0 %v480
        %610 = vmatprep.subr.mxu0 0.0
        %611 = vmatpush1.msra.mxu0 %v481
        %612 = vmatprep.subr.mxu0 0.0
        %613 = vmatpush1.msra.mxu0 %v482
        %614 = vmatprep.subr.mxu0 0.0
        %615 = vmatpush1.msra.mxu0 %v483
        %616 = vmatprep.subr.mxu0 0.0
        %617 = vmatpush1.msra.mxu0 %v484
        %618 = vmatprep.subr.mxu0 0.0
        %619 = vmatpush1.msra.mxu0 %v485
        %620 = vmatprep.subr.mxu0 0.0
        %621 = vmatpush1.msra.mxu0 %v486
        %622 = vmatprep.subr.mxu0 0.0
        %623 = vmatpush1.msra.mxu0 %v487
        %624 = vmatprep.subr.mxu0 0.0
        %625 = vmatpush1.msra.mxu0 %v488
        %626 = vmatprep.subr.mxu0 0.0
        %627 = vmatpush1.msra.mxu0 %v489
        %628 = vmatprep.subr.mxu0 0.0
        %629 = vmatpush1.msra.mxu0 %v490
        %630 = vmatprep.subr.mxu0 0.0
        %631 = vmatpush1.msra.mxu0 %v491
        %632 = vmatprep.subr.mxu0 0.0
        %633 = vmatpush1.msra.mxu0 %v492
        %634 = vmatprep.subr.mxu0 0.0
        %635 = vmatpush1.msra.mxu0 %v493
        %636 = vmatprep.subr.mxu0 0.0
        %637 = vmatpush1.msra.mxu0 %v494
        %638 = vmatprep.subr.mxu0 0.0
        %639 = vmatpush1.msra.mxu0 %v495
        %640 = vmatprep.subr.mxu0 0.0
        %641 = vmatpush1.msra.mxu0 %v496
        %642 = vmatprep.subr.mxu0 0.0
        %643 = vmatpush1.msra.mxu0 %v497
        %644 = vmatprep.subr.mxu0 0.0
        %645 = vmatpush1.msra.mxu0 %v498
        %646 = vmatprep.subr.mxu0 0.0
        %647 = vmatpush1.msra.mxu0 %v499
        %648 = vmatprep.subr.mxu0 0.0
        %649 = vmatpush1.msra.mxu0 %v500
        %650 = vmatprep.subr.mxu0 0.0
        %651 = vmatpush1.msra.mxu0 %v501
        %652 = vmatprep.subr.mxu0 0.0
        %653 = vmatpush1.msra.mxu0 %v502
        %654 = vmatprep.subr.mxu0 0.0
        %655 = vmatpush1.msra.mxu0 %v503
        %656 = vmatprep.subr.mxu0 0.0
        %657 = vmatpush1.msra.mxu0 %v504
        %658 = vmatprep.subr.mxu0 0.0
        %659 = vmatpush1.msra.mxu0 %v505
        %660 = vmatprep.subr.mxu0 0.0
        %661 = vmatpush1.msra.mxu0 %v506
        %662 = vmatprep.subr.mxu0 0.0
        %663 = vmatpush1.msra.mxu0 %v507
        %664 = vmatprep.subr.mxu0 0.0
        %665 = vmatpush1.msra.mxu0 %v508
        %666 = vmatprep.subr.mxu0 0.0
        %667 = vmatpush1.msra.mxu0 %v509
        %668 = vmatprep.subr.mxu0 0.0
        %669 = vmatpush1.msra.mxu0 %v510
        %670 = vmatprep.subr.mxu0 0.0
        %671 = vmatpush1.msra.mxu0 %v511
        %672 = vmatprep.mubr.f32.mxu0 %v449
        %673 = vmatmul.mubr.f32.gmra.mrb[0].mxu0 %v448
        %v674 = vpop.f32.mrb[0].mxu0
        %v675 = vadd.f32 %v531, %v674
        %v676 = vpop.f32.mrb[0].mxu0
        %677 = vmatprep.mubr.f32.mxu0 %v451
        %678 = vmatmul.mubr.f32.gmra.mrb[0].mxu0 %v450
        %v679 = vpop.f32.mrb[0].mxu0
        %v680 = vadd.f32 %v536, %v679
        %v681 = vpop.f32.mrb[0].mxu0
        %682 = vmatprep.mubr.f32.mxu0 %v453
        %683 = vmatmul.mubr.f32.gmra.mrb[0].mxu0 %v452
        %v684 = vpop.f32.mrb[0].mxu0
        %v685 = vadd.f32 %v541, %v684
        %v686 = vpop.f32.mrb[0].mxu0
        %687 = vmatprep.mubr.f32.mxu0 %v455
        %688 = vmatmul.mubr.f32.gmra.mrb[0].mxu0 %v454
        %v689 = vpop.f32.mrb[0].mxu0
        %v690 = vadd.f32 %v546, %v689
        %v691 = vpop.f32.mrb[0].mxu0
        %692 = vmatprep.mubr.f32.mxu0 %v457
        %693 = vmatmul.mubr.f32.gmra.mrb[0].mxu0 %v456
        %v694 = vpop.f32.mrb[0].mxu0
        %v695 = vadd.f32 %v551, %v694
        %v696 = vpop.f32.mrb[0].mxu0
        %697 = vmatprep.mubr.f32.mxu0 %v459
        %698 = vmatmul.mubr.f32.gmra.mrb[0].mxu0 %v458
        %v699 = vpop.f32.mrb[0].mxu0
        %v700 = vadd.f32 %v556, %v699
        %v701 = vpop.f32.mrb[0].mxu0
        %702 = vmatprep.mubr.f32.mxu0 %v461
        %703 = vmatmul.mubr.f32.gmra.mrb[0].mxu0 %v460
        %v704 = vpop.f32.mrb[0].mxu0
        %v705 = vadd.f32 %v561, %v704
        %v706 = vpop.f32.mrb[0].mxu0
        %707 = vmatprep.mubr.f32.mxu0 %v463
        %708 = vmatmul.mubr.f32.gmra.mrb[0].mxu0 %v462
        %v709 = vpop.f32.mrb[0].mxu0
        %v710 = vadd.f32 %v566, %v709
        %v711 = vpop.f32.mrb[0].mxu0
        %712 = vmatprep.mubr.f32.mxu0 %v465
        %713 = vmatmul.mubr.f32.gmra.mrb[0].mxu0 %v464
        %v714 = vpop.f32.mrb[0].mxu0
        %v715 = vadd.f32 %v571, %v714
        %v716 = vpop.f32.mrb[0].mxu0
        %717 = vmatprep.mubr.f32.mxu0 %v467
        %718 = vmatmul.mubr.f32.gmra.mrb[0].mxu0 %v466
        %v719 = vpop.f32.mrb[0].mxu0
        %v720 = vadd.f32 %v576, %v719
        %v721 = vpop.f32.mrb[0].mxu0
        %722 = vmatprep.mubr.f32.mxu0 %v469
        %723 = vmatmul.mubr.f32.gmra.mrb[0].mxu0 %v468
        %v724 = vpop.f32.mrb[0].mxu0
        %v725 = vadd.f32 %v581, %v724
        %v726 = vpop.f32.mrb[0].mxu0
        %727 = vmatprep.mubr.f32.mxu0 %v471
        %728 = vmatmul.mubr.f32.gmra.mrb[0].mxu0 %v470
        %v729 = vpop.f32.mrb[0].mxu0
        %v730 = vadd.f32 %v586, %v729
        %v731 = vpop.f32.mrb[0].mxu0
        %732 = vmatprep.mubr.f32.mxu0 %v473
        %733 = vmatmul.mubr.f32.gmra.mrb[0].mxu0 %v472
        %v734 = vpop.f32.mrb[0].mxu0
        %v735 = vadd.f32 %v591, %v734
        %v736 = vpop.f32.mrb[0].mxu0
        %737 = vmatprep.mubr.f32.mxu0 %v475
        %738 = vmatmul.mubr.f32.gmra.mrb[0].mxu0 %v474
        %v739 = vpop.f32.mrb[0].mxu0
        %v740 = vadd.f32 %v596, %v739
        %v741 = vpop.f32.mrb[0].mxu0
        %742 = vmatprep.mubr.f32.mxu0 %v477
        %743 = vmatmul.mubr.f32.gmra.mrb[0].mxu0 %v476
        %v744 = vpop.f32.mrb[0].mxu0
        %v745 = vadd.f32 %v601, %v744
        %v746 = vpop.f32.mrb[0].mxu0
        %747 = vmatprep.mubr.f32.mxu0 %v479
        %748 = vmatmul.mubr.f32.gmra.mrb[0].mxu0 %v478
        %v749 = vpop.f32.mrb[0].mxu0
        %v750 = vadd.f32 %v606, %v749
        %v751 = vpop.f32.mrb[0].mxu0
        %752 = vdwg.mxu0
        %v753 = vmax.f32 %v675, 0.0
        %v754 = vmax.f32 %v680, 0.0
        %v755 = vmax.f32 %v685, 0.0
        %v756 = vmax.f32 %v690, 0.0
        %v757 = vmax.f32 %v695, 0.0
        %v758 = vmax.f32 %v700, 0.0
        %v759 = vmax.f32 %v705, 0.0
        %v760 = vmax.f32 %v710, 0.0
        %v761 = vmax.f32 %v715, 0.0
        %v762 = vmax.f32 %v720, 0.0
        %v763 = vmax.f32 %v725, 0.0
        %v764 = vmax.f32 %v730, 0.0
        %v765 = vmax.f32 %v735, 0.0
        %v766 = vmax.f32 %v740, 0.0
        %v767 = vmax.f32 %v745, 0.0
        %v768 = vmax.f32 %v750, 0.0
        %v769 = vld [vmem:[%s5] sm:$0xff]
        %v770 = vld [vmem:[%s5 + $0x8] sm:$0xff]
        %v771 = vld [vmem:[%s5 + $0x10] sm:$0xff]
        %v772 = vld [vmem:[%s5 + $0x18] sm:$0xff]
        %v773 = vld [vmem:[%s5 + $0x20] sm:$0xff]
        %v774 = vld [vmem:[%s5 + $0x28] sm:$0xff]
        %v775 = vld [vmem:[%s5 + $0x30] sm:$0xff]
        %v776 = vld [vmem:[%s5 + $0x38] sm:$0xff]
        %v777 = vld [vmem:[%s6] sm:$0xff]
        %v778 = vld [vmem:[%s6 + $0x8] sm:$0xff]
        %v779 = vld [vmem:[%s6 + $0x10] sm:$0xff]
        %v780 = vld [vmem:[%s6 + $0x18] sm:$0xff]
        %v781 = vld [vmem:[%s6 + $0x20] sm:$0xff]
        %v782 = vld [vmem:[%s6 + $0x28] sm:$0xff]
        %v783 = vld [vmem:[%s6 + $0x30] sm:$0xff]
        %v784 = vld [vmem:[%s6 + $0x38] sm:$0xff]
        %786 = vset.pattern.permute.xlu0 0
        %787 = vperm.xlu0 %786, %v777
        %v788 = vpop.permute.xlu0 %787
        %791 = vset.pattern.permute.xlu0 0
        %792 = vperm.xlu0 %791, %v778
        %v793 = vpop.permute.xlu0 %792
        %796 = vset.pattern.permute.xlu0 0
        %797 = vperm.xlu0 %796, %v779
        %v798 = vpop.permute.xlu0 %797
        %801 = vset.pattern.permute.xlu0 0
        %802 = vperm.xlu0 %801, %v780
        %v803 = vpop.permute.xlu0 %802
        %806 = vset.pattern.permute.xlu0 0
        %807 = vperm.xlu0 %806, %v781
        %v808 = vpop.permute.xlu0 %807
        %811 = vset.pattern.permute.xlu0 0
        %812 = vperm.xlu0 %811, %v782
        %v813 = vpop.permute.xlu0 %812
        %816 = vset.pattern.permute.xlu0 0
        %817 = vperm.xlu0 %816, %v783
        %v818 = vpop.permute.xlu0 %817
        %821 = vset.pattern.permute.xlu0 0
        %822 = vperm.xlu0 %821, %v784
        %v823 = vpop.permute.xlu0 %822
        %825 = vmatprep.subr.mxu0 0.0
        %826 = vmatpush1.msra.mxu0 %v753
        %827 = vmatprep.subr.mxu0 0.0
        %828 = vmatpush1.msra.mxu0 %v754
        %829 = vmatprep.subr.mxu0 0.0
        %830 = vmatpush1.msra.mxu0 %v755
        %831 = vmatprep.subr.mxu0 0.0
        %832 = vmatpush1.msra.mxu0 %v756
        %833 = vmatprep.subr.mxu0 0.0
        %834 = vmatpush1.msra.mxu0 %v757
        %835 = vmatprep.subr.mxu0 0.0
        %836 = vmatpush1.msra.mxu0 %v758
        %837 = vmatprep.subr.mxu0 0.0
        %838 = vmatpush1.msra.mxu0 %v759
        %839 = vmatprep.subr.mxu0 0.0
        %840 = vmatpush1.msra.mxu0 %v760
        %841 = vmatprep.subr.mxu0 0.0
        %842 = vmatpush1.msra.mxu0 %v761
        %843 = vmatprep.subr.mxu0 0.0
        %844 = vmatpush1.msra.mxu0 %v762
        %845 = vmatprep.subr.mxu0 0.0
        %846 = vmatpush1.msra.mxu0 %v763
        %847 = vmatprep.subr.mxu0 0.0
        %848 = vmatpush1.msra.mxu0 %v764
        %849 = vmatprep.subr.mxu0 0.0
        %850 = vmatpush1.msra.mxu0 %v765
        %851 = vmatprep.subr.mxu0 0.0
        %852 = vmatpush1.msra.mxu0 %v766
        %853 = vmatprep.subr.mxu0 0.0
        %854 = vmatpush1.msra.mxu0 %v767
        %855 = vmatprep.subr.mxu0 0.0
        %856 = vmatpush1.msra.mxu0 %v768
        %857 = vmatprep.subr.mxu0 0.0
        %858 = vmatpush1.msra.mxu0 0.0
        %859 = vmatprep.subr.mxu0 0.0
        %860 = vmatpush1.msra.mxu0 0.0
        %861 = vmatprep.subr.mxu0 0.0
        %862 = vmatpush1.msra.mxu0 0.0
        %863 = vmatprep.subr.mxu0 0.0
        %864 = vmatpush1.msra.mxu0 0.0
        %865 = vmatprep.subr.mxu0 0.0
        %866 = vmatpush1.msra.mxu0 0.0
        %867 = vmatprep.subr.mxu0 0.0
        %868 = vmatpush1.msra.mxu0 0.0
        %869 = vmatprep.subr.mxu0 0.0
        %870 = vmatpush1.msra.mxu0 0.0
        %871 = vmatprep.subr.mxu0 0.0
        %872 = vmatpush1.msra.mxu0 0.0
        %873 = vmatprep.subr.mxu0 0.0
        %874 = vmatpush1.msra.mxu0 0.0
        %875 = vmatprep.subr.mxu0 0.0
        %876 = vmatpush1.msra.mxu0 0.0
        %877 = vmatprep.subr.mxu0 0.0
        %878 = vmatpush1.msra.mxu0 0.0
        %879 = vmatprep.subr.mxu0 0.0
        %880 = vmatpush1.msra.mxu0 0.0
        %881 = vmatprep.subr.mxu0 0.0
        %882 = vmatpush1.msra.mxu0 0.0
        %883 = vmatprep.subr.mxu0 0.0
        %884 = vmatpush1.msra.mxu0 0.0
        %885 = vmatprep.subr.mxu0 0.0
        %886 = vmatpush1.msra.mxu0 0.0
        %887 = vmatprep.subr.mxu0 0.0
        %888 = vmatpush1.msra.mxu0 0.0
        %889 = vmatprep.mubr.f32.mxu0 0.0
        %890 = vmatmul.mubr.f32.gmra.mrb[0].mxu0 %v769
        %v891 = vpop.f32.mrb[0].mxu0
        %v892 = vadd.f32 %v788, %v891
        %v893 = vpop.f32.mrb[0].mxu0
        %894 = vmatprep.mubr.f32.mxu0 0.0
        %895 = vmatmul.mubr.f32.gmra.mrb[0].mxu0 %v770
        %v896 = vpop.f32.mrb[0].mxu0
        %v897 = vadd.f32 %v793, %v896
        %v898 = vpop.f32.mrb[0].mxu0
        %899 = vmatprep.mubr.f32.mxu0 0.0
        %900 = vmatmul.mubr.f32.gmra.mrb[0].mxu0 %v771
        %v901 = vpop.f32.mrb[0].mxu0
        %v902 = vadd.f32 %v798, %v901
        %v903 = vpop.f32.mrb[0].mxu0
        %904 = vmatprep.mubr.f32.mxu0 0.0
        %905 = vmatmul.mubr.f32.gmra.mrb[0].mxu0 %v772
        %v906 = vpop.f32.mrb[0].mxu0
        %v907 = vadd.f32 %v803, %v906
        %v908 = vpop.f32.mrb[0].mxu0
        %909 = vmatprep.mubr.f32.mxu0 0.0
        %910 = vmatmul.mubr.f32.gmra.mrb[0].mxu0 %v773
        %v911 = vpop.f32.mrb[0].mxu0
        %v912 = vadd.f32 %v808, %v911
        %v913 = vpop.f32.mrb[0].mxu0
        %914 = vmatprep.mubr.f32.mxu0 0.0
        %915 = vmatmul.mubr.f32.gmra.mrb[0].mxu0 %v774
        %v916 = vpop.f32.mrb[0].mxu0
        %v917 = vadd.f32 %v813, %v916
        %v918 = vpop.f32.mrb[0].mxu0
        %919 = vmatprep.mubr.f32.mxu0 0.0
        %920 = vmatmul.mubr.f32.gmra.mrb[0].mxu0 %v775
        %v921 = vpop.f32.mrb[0].mxu0
        %v922 = vadd.f32 %v818, %v921
        %v923 = vpop.f32.mrb[0].mxu0
        %924 = vmatprep.mubr.f32.mxu0 0.0
        %925 = vmatmul.mubr.f32.gmra.mrb[0].mxu0 %v776
        %v926 = vpop.f32.mrb[0].mxu0
        %v927 = vadd.f32 %v823, %v926
        %v928 = vpop.f32.mrb[0].mxu0
        %929 = vdwg.mxu0
        %v930 = vmax.f32 %v892, 0.0
        %v931 = vmax.f32 %v897, 0.0
        %v932 = vmax.f32 %v902, 0.0
        %v933 = vmax.f32 %v907, 0.0
        %v934 = vmax.f32 %v912, 0.0
        %v935 = vmax.f32 %v917, 0.0
        %v936 = vmax.f32 %v922, 0.0
        %v937 = vmax.f32 %v927, 0.0
        %v938 = vld [vmem:[%s7] sm:$0xff]
        %v939 = vld [vmem:[%s7 + $0x8] sm:$0xff]
        %v940 = vld [vmem:[%s7 + $0x10] sm:$0xff]
        %v941 = vld [vmem:[%s7 + $0x18] sm:$0xff]
        %v942 = vld [vmem:[%s8] sm:$0xff]
        %v943 = vld [vmem:[%s8 + $0x8] sm:$0xff]
        %v944 = vld [vmem:[%s8 + $0x10] sm:$0xff]
        %v945 = vld [vmem:[%s8 + $0x18] sm:$0xff]
        %947 = vset.pattern.permute.xlu0 0
        %948 = vperm.xlu0 %947, %v942
        %v949 = vpop.permute.xlu0 %948
        %952 = vset.pattern.permute.xlu0 0
        %953 = vperm.xlu0 %952, %v943
        %v954 = vpop.permute.xlu0 %953
        %957 = vset.pattern.permute.xlu0 0
        %958 = vperm.xlu0 %957, %v944
        %v959 = vpop.permute.xlu0 %958
        %962 = vset.pattern.permute.xlu0 0
        %963 = vperm.xlu0 %962, %v945
        %v964 = vpop.permute.xlu0 %963
        %vm966 = vcmask 523264
        %v968 = vsel %vm966, %v938, 0
        %v971 = vsel %vm966, %v939, 0
        %v974 = vsel %vm966, %v940, 0
        %v977 = vsel %vm966, %v941, 0
        %979 = vmatprep.subr.mxu0 0.0
        %980 = vmatpush1.msra.mxu0 %v930
        %981 = vmatprep.subr.mxu0 0.0
        %982 = vmatpush1.msra.mxu0 %v931
        %983 = vmatprep.subr.mxu0 0.0
        %984 = vmatpush1.msra.mxu0 %v932
        %985 = vmatprep.subr.mxu0 0.0
        %986 = vmatpush1.msra.mxu0 %v933
        %987 = vmatprep.subr.mxu0 0.0
        %988 = vmatpush1.msra.mxu0 %v934
        %989 = vmatprep.subr.mxu0 0.0
        %990 = vmatpush1.msra.mxu0 %v935
        %991 = vmatprep.subr.mxu0 0.0
        %992 = vmatpush1.msra.mxu0 %v936
        %993 = vmatprep.subr.mxu0 0.0
        %994 = vmatpush1.msra.mxu0 %v937
        %995 = vmatprep.subr.mxu0 0.0
        %996 = vmatpush1.msra.mxu0 0.0
        %997 = vmatprep.subr.mxu0 0.0
        %998 = vmatpush1.msra.mxu0 0.0
        %999 = vmatprep.subr.mxu0 0.0
        %1000 = vmatpush1.msra.mxu0 0.0
        %1001 = vmatprep.subr.mxu0 0.0
        %1002 = vmatpush1.msra.mxu0 0.0
        %1003 = vmatprep.subr.mxu0 0.0
        %1004 = vmatpush1.msra.mxu0 0.0
        %1005 = vmatprep.subr.mxu0 0.0
        %1006 = vmatpush1.msra.mxu0 0.0
        %1007 = vmatprep.subr.mxu0 0.0
        %1008 = vmatpush1.msra.mxu0 0.0
        %1009 = vmatprep.subr.mxu0 0.0
        %1010 = vmatpush1.msra.mxu0 0.0
        %1011 = vmatprep.subr.mxu0 0.0
        %1012 = vmatpush1.msra.mxu0 0.0
        %1013 = vmatprep.subr.mxu0 0.0
        %1014 = vmatpush1.msra.mxu0 0.0
        %1015 = vmatprep.subr.mxu0 0.0
        %1016 = vmatpush1.msra.mxu0 0.0
        %1017 = vmatprep.subr.mxu0 0.0
        %1018 = vmatpush1.msra.mxu0 0.0
        %1019 = vmatprep.subr.mxu0 0.0
        %1020 = vmatpush1.msra.mxu0 0.0
        %1021 = vmatprep.subr.mxu0 0.0
        %1022 = vmatpush1.msra.mxu0 0.0
        %1023 = vmatprep.subr.mxu0 0.0
        %1024 = vmatpush1.msra.mxu0 0.0
        %1025 = vmatprep.subr.mxu0 0.0
        %1026 = vmatpush1.msra.mxu0 0.0
        %1027 = vmatprep.subr.mxu0 0.0
        %1028 = vmatpush1.msra.mxu0 0.0
        %1029 = vmatprep.subr.mxu0 0.0
        %1030 = vmatpush1.msra.mxu0 0.0
        %1031 = vmatprep.subr.mxu0 0.0
        %1032 = vmatpush1.msra.mxu0 0.0
        %1033 = vmatprep.subr.mxu0 0.0
        %1034 = vmatpush1.msra.mxu0 0.0
        %1035 = vmatprep.subr.mxu0 0.0
        %1036 = vmatpush1.msra.mxu0 0.0
        %1037 = vmatprep.subr.mxu0 0.0
        %1038 = vmatpush1.msra.mxu0 0.0
        %1039 = vmatprep.subr.mxu0 0.0
        %1040 = vmatpush1.msra.mxu0 0.0
        %1041 = vmatprep.subr.mxu0 0.0
        %1042 = vmatpush1.msra.mxu0 0.0
        %1043 = vmatprep.mubr.f32.mxu0 0.0
        %1044 = vmatmul.mubr.f32.gmra.mrb[0].mxu0 %v968
        %v1045 = vpop.f32.mrb[0].mxu0
        %v1046 = vadd.f32 %v949, %v1045
        %v1047 = vpop.f32.mrb[0].mxu0
        %1048 = vmatprep.mubr.f32.mxu0 0.0
        %1049 = vmatmul.mubr.f32.gmra.mrb[0].mxu0 %v971
        %v1050 = vpop.f32.mrb[0].mxu0
        %v1051 = vadd.f32 %v954, %v1050
        %v1052 = vpop.f32.mrb[0].mxu0
        %1053 = vmatprep.mubr.f32.mxu0 0.0
        %1054 = vmatmul.mubr.f32.gmra.mrb[0].mxu0 %v974
        %v1055 = vpop.f32.mrb[0].mxu0
        %v1056 = vadd.f32 %v959, %v1055
        %v1057 = vpop.f32.mrb[0].mxu0
        %1058 = vmatprep.mubr.f32.mxu0 0.0
        %1059 = vmatmul.mubr.f32.gmra.mrb[0].mxu0 %v977
        %v1060 = vpop.f32.mrb[0].mxu0
        %v1061 = vadd.f32 %v964, %v1060
        %v1062 = vpop.f32.mrb[0].mxu0
        %1063 = vdwg.mxu0
        %v1064 = vmax.f32 %v1046, 0.0
        %v1065 = vmax.f32 %v1051, 0.0
        %v1066 = vmax.f32 %v1056, 0.0
        %v1067 = vmax.f32 %v1061, 0.0
        %v1068 = vlaneseq
        %v1069 = vshrl.u32 %v1068, 7
        %v1070 = vadd.s32 %v1069, 8
        %v1071 = vadd.s32 %v1069, 16
        %v1072 = vadd.s32 %v1069, 24
        %v1073 = vadd.s32 %v1069, 32
        %v1074 = vadd.s32 %v1069, 40
        %v1075 = vadd.s32 %v1069, 48
        %v1076 = vadd.s32 %v1069, 56
        %v1077 = vld [vmem:[%s444] sm:$0x1]
        %v1078 = vlaneseq
        %v1079 = vshrl.u32 %v1078, 7
        %v1080 = vsub.s32 0, %v1079
        %v1081 = vrot.slane %v1077, %v1080
        %vm1082 = vcmp.eq.s32.totalorder %v1069, %v1081
        %vm1083 = vcmp.eq.s32.totalorder %v1070, %v1081
        %vm1084 = vcmp.eq.s32.totalorder %v1071, %v1081
        %vm1085 = vcmp.eq.s32.totalorder %v1072, %v1081
        %vm1086 = vcmp.eq.s32.totalorder %v1073, %v1081
        %vm1087 = vcmp.eq.s32.totalorder %v1074, %v1081
        %vm1088 = vcmp.eq.s32.totalorder %v1075, %v1081
        %vm1089 = vcmp.eq.s32.totalorder %v1076, %v1081
        %v1090 = vsel %vm1082, 1, 0
        %v1091 = vsel %vm1083, 1, 0
        %v1092 = vsel %vm1084, 1, 0
        %v1093 = vsel %vm1085, 1, 0
        %v1094 = vsel %vm1086, 1, 0
        %v1095 = vsel %vm1087, 1, 0
        %v1096 = vsel %vm1088, 1, 0
        %v1097 = vsel %vm1089, 1, 0
        %v1098 = vcvt.s32.f32 %v1090
        %v1099 = vcvt.s32.f32 %v1091
        %v1100 = vcvt.s32.f32 %v1092
        %v1101 = vcvt.s32.f32 %v1093
        %v1102 = vcvt.s32.f32 %v1094
        %v1103 = vcvt.s32.f32 %v1095
        %v1104 = vcvt.s32.f32 %v1096
        %v1105 = vcvt.s32.f32 %v1097
        %v1106 = vld [vmem:[%s447] sm:$0x1]
        %v1107 = vlaneseq
        %v1108 = vshrl.u32 %v1107, 7
        %v1109 = vsub.s32 0, %v1108
        %v1110 = vrot.slane %v1106, %v1109
        %vm1111 = vcmp.eq.s32.totalorder %v1069, %v1110
        %vm1112 = vcmp.eq.s32.totalorder %v1070, %v1110
        %vm1113 = vcmp.eq.s32.totalorder %v1071, %v1110
        %vm1114 = vcmp.eq.s32.totalorder %v1072, %v1110
        %vm1115 = vcmp.eq.s32.totalorder %v1073, %v1110
        %vm1116 = vcmp.eq.s32.totalorder %v1074, %v1110
        %vm1117 = vcmp.eq.s32.totalorder %v1075, %v1110
        %vm1118 = vcmp.eq.s32.totalorder %v1076, %v1110
        %v1119 = vsel %vm1111, 1, 0
        %v1120 = vsel %vm1112, 1, 0
        %v1121 = vsel %vm1113, 1, 0
        %v1122 = vsel %vm1114, 1, 0
        %v1123 = vsel %vm1115, 1, 0
        %v1124 = vsel %vm1116, 1, 0
        %v1125 = vsel %vm1117, 1, 0
        %v1126 = vsel %vm1118, 1, 0
        %v1127 = vcvt.s32.f32 %v1119
        %v1128 = vcvt.s32.f32 %v1120
        %v1129 = vcvt.s32.f32 %v1121
        %v1130 = vcvt.s32.f32 %v1122
        %v1131 = vcvt.s32.f32 %v1123
        %v1132 = vcvt.s32.f32 %v1124
        %v1133 = vcvt.s32.f32 %v1125
        %v1134 = vcvt.s32.f32 %v1126
        %v1136 = vsel %vm966, %v1064, 0
        %v1139 = vsel %vm966, %v1065, 0
        %v1142 = vsel %vm966, %v1066, 0
        %v1145 = vsel %vm966, %v1067, 0
        %1147 = vmatprep.subr.mxu0 0.0
        %1148 = vmatpush1.msra.mxu0 %v1098
        %1149 = vmatprep.subr.mxu0 0.0
        %1150 = vmatpush1.msra.mxu0 %v1099
        %1151 = vmatprep.subr.mxu0 0.0
        %1152 = vmatpush1.msra.mxu0 %v1100
        %1153 = vmatprep.subr.mxu0 0.0
        %1154 = vmatpush1.msra.mxu0 %v1101
        %1155 = vmatprep.subr.mxu0 0.0
        %1156 = vmatpush1.msra.mxu0 %v1102
        %1157 = vmatprep.subr.mxu0 0.0
        %1158 = vmatpush1.msra.mxu0 %v1103
        %1159 = vmatprep.subr.mxu0 0.0
        %1160 = vmatpush1.msra.mxu0 %v1104
        %1161 = vmatprep.subr.mxu0 0.0
        %1162 = vmatpush1.msra.mxu0 %v1105
        %1163 = vmatprep.subr.mxu0 0.0
        %1164 = vmatpush1.msra.mxu0 0.0
        %1165 = vmatprep.subr.mxu0 0.0
        %1166 = vmatpush1.msra.mxu0 0.0
        %1167 = vmatprep.subr.mxu0 0.0
        %1168 = vmatpush1.msra.mxu0 0.0
        %1169 = vmatprep.subr.mxu0 0.0
        %1170 = vmatpush1.msra.mxu0 0.0
        %1171 = vmatprep.subr.mxu0 0.0
        %1172 = vmatpush1.msra.mxu0 0.0
        %1173 = vmatprep.subr.mxu0 0.0
        %1174 = vmatpush1.msra.mxu0 0.0
        %1175 = vmatprep.subr.mxu0 0.0
        %1176 = vmatpush1.msra.mxu0 0.0
        %1177 = vmatprep.subr.mxu0 0.0
        %1178 = vmatpush1.msra.mxu0 0.0
        %1179 = vmatprep.subr.mxu0 0.0
        %1180 = vmatpush1.msra.mxu0 0.0
        %1181 = vmatprep.subr.mxu0 0.0
        %1182 = vmatpush1.msra.mxu0 0.0
        %1183 = vmatprep.subr.mxu0 0.0
        %1184 = vmatpush1.msra.mxu0 0.0
        %1185 = vmatprep.subr.mxu0 0.0
        %1186 = vmatpush1.msra.mxu0 0.0
        %1187 = vmatprep.subr.mxu0 0.0
        %1188 = vmatpush1.msra.mxu0 0.0
        %1189 = vmatprep.subr.mxu0 0.0
        %1190 = vmatpush1.msra.mxu0 0.0
        %1191 = vmatprep.subr.mxu0 0.0
        %1192 = vmatpush1.msra.mxu0 0.0
        %1193 = vmatprep.subr.mxu0 0.0
        %1194 = vmatpush1.msra.mxu0 0.0
        %1195 = vmatprep.subr.mxu0 0.0
        %1196 = vmatpush1.msra.mxu0 0.0
        %1197 = vmatprep.subr.mxu0 0.0
        %1198 = vmatpush1.msra.mxu0 0.0
        %1199 = vmatprep.subr.mxu0 0.0
        %1200 = vmatpush1.msra.mxu0 0.0
        %1201 = vmatprep.subr.mxu0 0.0
        %1202 = vmatpush1.msra.mxu0 0.0
        %1203 = vmatprep.subr.mxu0 0.0
        %1204 = vmatpush1.msra.mxu0 0.0
        %1205 = vmatprep.subr.mxu0 0.0
        %1206 = vmatpush1.msra.mxu0 0.0
        %1207 = vmatprep.subr.mxu0 0.0
        %1208 = vmatpush1.msra.mxu0 0.0
        %1209 = vmatprep.subr.mxu0 0.0
        %1210 = vmatpush1.msra.mxu0 0.0
        %1211 = vmatprep.mubr.f32.mxu0 0.0
        %1212 = vmatmul.mubr.f32.gmra.mrb[0].mxu0 %v1136
        %v1213 = vpop.f32.mrb[0].mxu0
        %v1214 = vadd.f32 0.0, %v1213
        %v1215 = vpop.f32.mrb[0].mxu0
        %1216 = vmatprep.mubr.f32.mxu0 0.0
        %1217 = vmatmul.mubr.f32.gmra.mrb[0].mxu0 %v1139
        %v1218 = vpop.f32.mrb[0].mxu0
        %v1219 = vadd.f32 0.0, %v1218
        %v1220 = vpop.f32.mrb[0].mxu0
        %1221 = vmatprep.mubr.f32.mxu0 0.0
        %1222 = vmatmul.mubr.f32.gmra.mrb[0].mxu0 %v1142
        %v1223 = vpop.f32.mrb[0].mxu0
        %v1224 = vadd.f32 0.0, %v1223
        %v1225 = vpop.f32.mrb[0].mxu0
        %1226 = vmatprep.mubr.f32.mxu0 0.0
        %1227 = vmatmul.mubr.f32.gmra.mrb[0].mxu0 %v1145
        %v1228 = vpop.f32.mrb[0].mxu0
        %v1229 = vadd.f32 0.0, %v1228
        %v1230 = vpop.f32.mrb[0].mxu0
        %1231 = vdwg.mxu0
        %1232 = vmatprep.subr.mxu0 0.0
        %1233 = vmatpush1.msra.mxu0 %v1127
        %1234 = vmatprep.subr.mxu0 0.0
        %1235 = vmatpush1.msra.mxu0 %v1128
        %1236 = vmatprep.subr.mxu0 0.0
        %1237 = vmatpush1.msra.mxu0 %v1129
        %1238 = vmatprep.subr.mxu0 0.0
        %1239 = vmatpush1.msra.mxu0 %v1130
        %1240 = vmatprep.subr.mxu0 0.0
        %1241 = vmatpush1.msra.mxu0 %v1131
        %1242 = vmatprep.subr.mxu0 0.0
        %1243 = vmatpush1.msra.mxu0 %v1132
        %1244 = vmatprep.subr.mxu0 0.0
        %1245 = vmatpush1.msra.mxu0 %v1133
        %1246 = vmatprep.subr.mxu0 0.0
        %1247 = vmatpush1.msra.mxu0 %v1134
        %1248 = vmatprep.subr.mxu0 0.0
        %1249 = vmatpush1.msra.mxu0 0.0
        %1250 = vmatprep.subr.mxu0 0.0
        %1251 = vmatpush1.msra.mxu0 0.0
        %1252 = vmatprep.subr.mxu0 0.0
        %1253 = vmatpush1.msra.mxu0 0.0
        %1254 = vmatprep.subr.mxu0 0.0
        %1255 = vmatpush1.msra.mxu0 0.0
        %1256 = vmatprep.subr.mxu0 0.0
        %1257 = vmatpush1.msra.mxu0 0.0
        %1258 = vmatprep.subr.mxu0 0.0
        %1259 = vmatpush1.msra.mxu0 0.0
        %1260 = vmatprep.subr.mxu0 0.0
        %1261 = vmatpush1.msra.mxu0 0.0
        %1262 = vmatprep.subr.mxu0 0.0
        %1263 = vmatpush1.msra.mxu0 0.0
        %1264 = vmatprep.subr.mxu0 0.0
        %1265 = vmatpush1.msra.mxu0 0.0
        %1266 = vmatprep.subr.mxu0 0.0
        %1267 = vmatpush1.msra.mxu0 0.0
        %1268 = vmatprep.subr.mxu0 0.0
        %1269 = vmatpush1.msra.mxu0 0.0
        %1270 = vmatprep.subr.mxu0 0.0
        %1271 = vmatpush1.msra.mxu0 0.0
        %1272 = vmatprep.subr.mxu0 0.0
        %1273 = vmatpush1.msra.mxu0 0.0
        %1274 = vmatprep.subr.mxu0 0.0
        %1275 = vmatpush1.msra.mxu0 0.0
        %1276 = vmatprep.subr.mxu0 0.0
        %1277 = vmatpush1.msra.mxu0 0.0
        %1278 = vmatprep.subr.mxu0 0.0
        %1279 = vmatpush1.msra.mxu0 0.0
        %1280 = vmatprep.subr.mxu0 0.0
        %1281 = vmatpush1.msra.mxu0 0.0
        %1282 = vmatprep.subr.mxu0 0.0
        %1283 = vmatpush1.msra.mxu0 0.0
        %1284 = vmatprep.subr.mxu0 0.0
        %1285 = vmatpush1.msra.mxu0 0.0
        %1286 = vmatprep.subr.mxu0 0.0
        %1287 = vmatpush1.msra.mxu0 0.0
        %1288 = vmatprep.subr.mxu0 0.0
        %1289 = vmatpush1.msra.mxu0 0.0
        %1290 = vmatprep.subr.mxu0 0.0
        %1291 = vmatpush1.msra.mxu0 0.0
        %1292 = vmatprep.subr.mxu0 0.0
        %1293 = vmatpush1.msra.mxu0 0.0
        %1294 = vmatprep.subr.mxu0 0.0
        %1295 = vmatpush1.msra.mxu0 0.0
        %1296 = vmatprep.mubr.f32.mxu0 0.0
        %1297 = vmatmul.mubr.f32.gmra.mrb[0].mxu0 %v1136
        %v1298 = vpop.f32.mrb[0].mxu0
        %v1299 = vadd.f32 0.0, %v1298
        %v1300 = vpop.f32.mrb[0].mxu0
        %1301 = vmatprep.mubr.f32.mxu0 0.0
        %1302 = vmatmul.mubr.f32.gmra.mrb[0].mxu0 %v1139
        %v1303 = vpop.f32.mrb[0].mxu0
        %v1304 = vadd.f32 0.0, %v1303
        %v1305 = vpop.f32.mrb[0].mxu0
        %1306 = vmatprep.mubr.f32.mxu0 0.0
        %1307 = vmatmul.mubr.f32.gmra.mrb[0].mxu0 %v1142
        %v1308 = vpop.f32.mrb[0].mxu0
        %v1309 = vadd.f32 0.0, %v1308
        %v1310 = vpop.f32.mrb[0].mxu0
        %1311 = vmatprep.mubr.f32.mxu0 0.0
        %1312 = vmatmul.mubr.f32.gmra.mrb[0].mxu0 %v1145
        %v1313 = vpop.f32.mrb[0].mxu0
        %v1314 = vadd.f32 0.0, %v1313
        %v1315 = vpop.f32.mrb[0].mxu0
        %1316 = vdwg.mxu0
        %v1317 = vld [vmem:[%s9] sm:$0x1]
        %v1318 = vld [vmem:[%s10] sm:$0x1]
        %vm1319 = vcmask 261120
        %v1321 = vsel %vm1319, %v1318, 0
        %1323 = vmatprep.subr.mxu0 0.0
        %1324 = vmatpush1.msra.mxu0 %v1299
        %1325 = vmatprep.subr.mxu0 0.0
        %1326 = vmatpush1.msra.mxu0 %v1304
        %1327 = vmatprep.subr.mxu0 0.0
        %1328 = vmatpush1.msra.mxu0 %v1309
        %1329 = vmatprep.subr.mxu0 0.0
        %1330 = vmatpush1.msra.mxu0 %v1314
        %1331 = vmatprep.subr.mxu0 0.0
        %1332 = vmatpush1.msra.mxu0 0.0
        %1333 = vmatprep.subr.mxu0 0.0
        %1334 = vmatpush1.msra.mxu0 0.0
        %1335 = vmatprep.subr.mxu0 0.0
        %1336 = vmatpush1.msra.mxu0 0.0
        %1337 = vmatprep.subr.mxu0 0.0
        %1338 = vmatpush1.msra.mxu0 0.0
        %1339 = vmatprep.subr.mxu0 0.0
        %1340 = vmatpush1.msra.mxu0 0.0
        %1341 = vmatprep.subr.mxu0 0.0
        %1342 = vmatpush1.msra.mxu0 0.0
        %1343 = vmatprep.subr.mxu0 0.0
        %1344 = vmatpush1.msra.mxu0 0.0
        %1345 = vmatprep.subr.mxu0 0.0
        %1346 = vmatpush1.msra.mxu0 0.0
        %1347 = vmatprep.subr.mxu0 0.0
        %1348 = vmatpush1.msra.mxu0 0.0
        %1349 = vmatprep.subr.mxu0 0.0
        %1350 = vmatpush1.msra.mxu0 0.0
        %1351 = vmatprep.subr.mxu0 0.0
        %1352 = vmatpush1.msra.mxu0 0.0
        %1353 = vmatprep.subr.mxu0 0.0
        %1354 = vmatpush1.msra.mxu0 0.0
        %1355 = vmatprep.subr.mxu0 0.0
        %1356 = vmatpush1.msra.mxu0 0.0
        %1357 = vmatprep.subr.mxu0 0.0
        %1358 = vmatpush1.msra.mxu0 0.0
        %1359 = vmatprep.subr.mxu0 0.0
        %1360 = vmatpush1.msra.mxu0 0.0
        %1361 = vmatprep.subr.mxu0 0.0
        %1362 = vmatpush1.msra.mxu0 0.0
        %1363 = vmatprep.subr.mxu0 0.0
        %1364 = vmatpush1.msra.mxu0 0.0
        %1365 = vmatprep.subr.mxu0 0.0
        %1366 = vmatpush1.msra.mxu0 0.0
        %1367 = vmatprep.subr.mxu0 0.0
        %1368 = vmatpush1.msra.mxu0 0.0
        %1369 = vmatprep.subr.mxu0 0.0
        %1370 = vmatpush1.msra.mxu0 0.0
        %1371 = vmatprep.subr.mxu0 0.0
        %1372 = vmatpush1.msra.mxu0 0.0
        %1373 = vmatprep.subr.mxu0 0.0
        %1374 = vmatpush1.msra.mxu0 0.0
        %1375 = vmatprep.subr.mxu0 0.0
        %1376 = vmatpush1.msra.mxu0 0.0
        %1377 = vmatprep.subr.mxu0 0.0
        %1378 = vmatpush1.msra.mxu0 0.0
        %1379 = vmatprep.subr.mxu0 0.0
        %1380 = vmatpush1.msra.mxu0 0.0
        %1381 = vmatprep.subr.mxu0 0.0
        %1382 = vmatpush1.msra.mxu0 0.0
        %1383 = vmatprep.subr.mxu0 0.0
        %1384 = vmatpush1.msra.mxu0 0.0
        %1385 = vmatprep.subr.mxu0 0.0
        %1386 = vmatpush1.msra.mxu0 0.0
        %1387 = vmatprep.mubr.f32.mxu0 0.0
        %1388 = vmatmul.mubr.f32.gmra.mrb[0].mxu0 %v1321
        %v1389 = vpop.f32.mrb[0].mxu0
        %v1390 = vadd.f32 0.0, %v1389
        %v1391 = vpop.f32.mrb[0].mxu0
        %1392 = vdwg.mxu0
        %v1394 = vsel %vm1319, %v1317, 0
        %1396 = vmatprep.subr.mxu0 0.0
        %1397 = vmatpush1.msra.mxu0 %v1214
        %1398 = vmatprep.subr.mxu0 0.0
        %1399 = vmatpush1.msra.mxu0 %v1219
        %1400 = vmatprep.subr.mxu0 0.0
        %1401 = vmatpush1.msra.mxu0 %v1224
        %1402 = vmatprep.subr.mxu0 0.0
        %1403 = vmatpush1.msra.mxu0 %v1229
        %1404 = vmatprep.subr.mxu0 0.0
        %1405 = vmatpush1.msra.mxu0 0.0
        %1406 = vmatprep.subr.mxu0 0.0
        %1407 = vmatpush1.msra.mxu0 0.0
        %1408 = vmatprep.subr.mxu0 0.0
        %1409 = vmatpush1.msra.mxu0 0.0
        %1410 = vmatprep.subr.mxu0 0.0
        %1411 = vmatpush1.msra.mxu0 0.0
        %1412 = vmatprep.subr.mxu0 0.0
        %1413 = vmatpush1.msra.mxu0 0.0
        %1414 = vmatprep.subr.mxu0 0.0
        %1415 = vmatpush1.msra.mxu0 0.0
        %1416 = vmatprep.subr.mxu0 0.0
        %1417 = vmatpush1.msra.mxu0 0.0
        %1418 = vmatprep.subr.mxu0 0.0
        %1419 = vmatpush1.msra.mxu0 0.0
        %1420 = vmatprep.subr.mxu0 0.0
        %1421 = vmatpush1.msra.mxu0 0.0
        %1422 = vmatprep.subr.mxu0 0.0
        %1423 = vmatpush1.msra.mxu0 0.0
        %1424 = vmatprep.subr.mxu0 0.0
        %1425 = vmatpush1.msra.mxu0 0.0
        %1426 = vmatprep.subr.mxu0 0.0
        %1427 = vmatpush1.msra.mxu0 0.0
        %1428 = vmatprep.subr.mxu0 0.0
        %1429 = vmatpush1.msra.mxu0 0.0
        %1430 = vmatprep.subr.mxu0 0.0
        %1431 = vmatpush1.msra.mxu0 0.0
        %1432 = vmatprep.subr.mxu0 0.0
        %1433 = vmatpush1.msra.mxu0 0.0
        %1434 = vmatprep.subr.mxu0 0.0
        %1435 = vmatpush1.msra.mxu0 0.0
        %1436 = vmatprep.subr.mxu0 0.0
        %1437 = vmatpush1.msra.mxu0 0.0
        %1438 = vmatprep.subr.mxu0 0.0
        %1439 = vmatpush1.msra.mxu0 0.0
        %1440 = vmatprep.subr.mxu0 0.0
        %1441 = vmatpush1.msra.mxu0 0.0
        %1442 = vmatprep.subr.mxu0 0.0
        %1443 = vmatpush1.msra.mxu0 0.0
        %1444 = vmatprep.subr.mxu0 0.0
        %1445 = vmatpush1.msra.mxu0 0.0
        %1446 = vmatprep.subr.mxu0 0.0
        %1447 = vmatpush1.msra.mxu0 0.0
        %1448 = vmatprep.subr.mxu0 0.0
        %1449 = vmatpush1.msra.mxu0 0.0
        %1450 = vmatprep.subr.mxu0 0.0
        %1451 = vmatpush1.msra.mxu0 0.0
        %1452 = vmatprep.subr.mxu0 0.0
        %1453 = vmatpush1.msra.mxu0 0.0
        %1454 = vmatprep.subr.mxu0 0.0
        %1455 = vmatpush1.msra.mxu0 0.0
        %1456 = vmatprep.subr.mxu0 0.0
        %1457 = vmatpush1.msra.mxu0 0.0
        %1458 = vmatprep.subr.mxu0 0.0
        %1459 = vmatpush1.msra.mxu0 0.0
        %1460 = vmatprep.mubr.f32.mxu0 0.0
        %1461 = vmatmul.mubr.f32.gmra.mrb[0].mxu0 %v1394
        %v1462 = vpop.f32.mrb[0].mxu0
        %v1463 = vadd.f32 %v1390, %v1462
        %v1464 = vpop.f32.mrb[0].mxu0
        %1465 = vdwg.mxu0
        %v1466 = vld [vmem:[%s11] sm:$0x1]
        %v1467 = vmul.f32 %v1214, %v1299
        %v1468 = vmul.f32 %v1219, %v1304
        %v1469 = vmul.f32 %v1224, %v1309
        %v1470 = vmul.f32 %v1229, %v1314
        %v1472 = vsel %vm1319, %v1466, 0
        %1474 = vmatprep.subr.mxu0 0.0
        %1475 = vmatpush1.msra.mxu0 %v1467
        %1476 = vmatprep.subr.mxu0 0.0
        %1477 = vmatpush1.msra.mxu0 %v1468
        %1478 = vmatprep.subr.mxu0 0.0
        %1479 = vmatpush1.msra.mxu0 %v1469
        %1480 = vmatprep.subr.mxu0 0.0
        %1481 = vmatpush1.msra.mxu0 %v1470
        %1482 = vmatprep.subr.mxu0 0.0
        %1483 = vmatpush1.msra.mxu0 0.0
        %1484 = vmatprep.subr.mxu0 0.0
        %1485 = vmatpush1.msra.mxu0 0.0
        %1486 = vmatprep.subr.mxu0 0.0
        %1487 = vmatpush1.msra.mxu0 0.0
        %1488 = vmatprep.subr.mxu0 0.0
        %1489 = vmatpush1.msra.mxu0 0.0
        %1490 = vmatprep.subr.mxu0 0.0
        %1491 = vmatpush1.msra.mxu0 0.0
        %1492 = vmatprep.subr.mxu0 0.0
        %1493 = vmatpush1.msra.mxu0 0.0
        %1494 = vmatprep.subr.mxu0 0.0
        %1495 = vmatpush1.msra.mxu0 0.0
        %1496 = vmatprep.subr.mxu0 0.0
        %1497 = vmatpush1.msra.mxu0 0.0
        %1498 = vmatprep.subr.mxu0 0.0
        %1499 = vmatpush1.msra.mxu0 0.0
        %1500 = vmatprep.subr.mxu0 0.0
        %1501 = vmatpush1.msra.mxu0 0.0
        %1502 = vmatprep.subr.mxu0 0.0
        %1503 = vmatpush1.msra.mxu0 0.0
        %1504 = vmatprep.subr.mxu0 0.0
        %1505 = vmatpush1.msra.mxu0 0.0
        %1506 = vmatprep.subr.mxu0 0.0
        %1507 = vmatpush1.msra.mxu0 0.0
        %1508 = vmatprep.subr.mxu0 0.0
        %1509 = vmatpush1.msra.mxu0 0.0
        %1510 = vmatprep.subr.mxu0 0.0
        %1511 = vmatpush1.msra.mxu0 0.0
        %1512 = vmatprep.subr.mxu0 0.0
        %1513 = vmatpush1.msra.mxu0 0.0
        %1514 = vmatprep.subr.mxu0 0.0
        %1515 = vmatpush1.msra.mxu0 0.0
        %1516 = vmatprep.subr.mxu0 0.0
        %1517 = vmatpush1.msra.mxu0 0.0
        %1518 = vmatprep.subr.mxu0 0.0
        %1519 = vmatpush1.msra.mxu0 0.0
        %1520 = vmatprep.subr.mxu0 0.0
        %1521 = vmatpush1.msra.mxu0 0.0
        %1522 = vmatprep.subr.mxu0 0.0
        %1523 = vmatpush1.msra.mxu0 0.0
        %1524 = vmatprep.subr.mxu0 0.0
        %1525 = vmatpush1.msra.mxu0 0.0
        %1526 = vmatprep.subr.mxu0 0.0
        %1527 = vmatpush1.msra.mxu0 0.0
        %1528 = vmatprep.subr.mxu0 0.0
        %1529 = vmatpush1.msra.mxu0 0.0
        %1530 = vmatprep.subr.mxu0 0.0
        %1531 = vmatpush1.msra.mxu0 0.0
        %1532 = vmatprep.subr.mxu0 0.0
        %1533 = vmatpush1.msra.mxu0 0.0
        %1534 = vmatprep.subr.mxu0 0.0
        %1535 = vmatpush1.msra.mxu0 0.0
        %1536 = vmatprep.subr.mxu0 0.0
        %1537 = vmatpush1.msra.mxu0 0.0
        %1538 = vmatprep.mubr.f32.mxu0 0.0
        %1539 = vmatmul.mubr.f32.gmra.mrb[0].mxu0 %v1472
        %v1540 = vpop.f32.mrb[0].mxu0
        %v1541 = vadd.f32 0.0, %v1540
        %v1542 = vpop.f32.mrb[0].mxu0
        %1543 = vdwg.mxu0
        %v1544 = vadd.f32 %v1463, %v1541
        %v1545 = vld [vmem:[#allocation2] sm:$0x1]
        %1547 = vset.pattern.permute.xlu0 0
        %1548 = vperm.xlu0 %1547, %v1545
        %v1549 = vpop.permute.xlu0 %1548
        %v1551 = vlaneseq
        %v1552 = vshrl.u32 %v1551, 7
        %v1553 = vsub.s32 0, %v1552
        %v1554 = vrot.slane %v1549, %v1553
        %v1555 = vadd.f32 %v1544, %v1554
        %v1556 = vxor.u32 %v1555, 2147483648
        %v1557 = vmul.f32 %v1556, 1.442695
        %v1558 = vpow.pop %v1557
        %v1559 = vadd.f32 %v1558, 1.0
        %v1560 = vrcp.pop %v1559
        %v1561 = vmul.f32 1.0, %v1560
        %1562 = vst [vmem:[%s441] sm:$0x1] %v1561
        %s1563 = sand.u32 %s320, 1
        %s1564 = scalar_lea.sflag [#allocation4], %s1563
        %s1565 = sand.u32 %s320, 1
        %s1566 = scalar_lea.vmem [#allocation3], %s1565
        // Predicated region
        $region73: #{tpu_custom_call.1} parent=71 // pred_check
          %p1567 = pneg %p330
        $region74: #{tpu_custom_call.1} parent=71 // pred_check_branch
          %1569 = sbr.rel (%p1567) target = $region76
        $region75: #{tpu_custom_call.1} parent=71 // pred_region
          %s1571 = ssub.s32 16, 16
          %1572 = vsyncadd %s1564, %s1571
          %s1573 = smul.addr %s29, 16
          %s1574 = scalar_lea.hbm %s13, %s1573
          %s1576 = sshll.u32 %s1566, 4
          %s1577 = int_to_ptr.vmem [resolvable:$true] %s1576
          %1579 = dma.vmem_to_hbm [thread:$0]  %s1577, 16, %s1574, %s1564
        $region76: #{tpu_custom_call.1} parent=71 // pred_fallthru
          _
      $region72: #{tpu_custom_call.1} parent=5 // pred_fallthru
        _
      %p1580 = scmp.le.s32.totalorder 2, %s24
      // Predicated region
      $region77: #{tpu_custom_call.1} parent=5 // pred_check
        %p1581 = pneg %p1580
      $region78: #{tpu_custom_call.1} parent=5 // pred_check_branch
        %1583 = sbr.rel (%p1581) target = $region80
      $region79: #{tpu_custom_call.1} parent=5 // pred_region
        %s1584 = ssub.s32 %s24, 2
        // Predicated region
        $region81: #{tpu_custom_call.1} parent=79 // pred_check
          %p1585 = pneg %p336
        $region82: #{tpu_custom_call.1} parent=79 // pred_check_branch
          %1587 = sbr.rel (%p1585) target = $region84
        $region83: #{tpu_custom_call.1} parent=79 // pred_region
          %s1588 = sand.u32 %s321, 1
          %s1589 = scalar_lea.sflag [#allocation4], %s1588
          %s1590 = sand.u32 %s321, 1
          %s1591 = scalar_lea.vmem [#allocation3], %s1590
          %1592 = dma.done %s1589, 16
        $region84: #{tpu_custom_call.1} parent=79 // pred_fallthru
          _
      $region80: #{tpu_custom_call.1} parent=5 // pred_fallthru
        _
    $region6: #{tpu_custom_call.1} parent=1 // loop_footer
      %s28 = sadd.s32 1, %s24
    $region7: #{tpu_custom_call.1} parent=1 // loop_footer_branch
      %23 = sbr.rel target = $region3
    $region8: #{tpu_custom_call.1} parent=1 // loop_exit
      _
    %1593 = vsyncpa [#allocation4], 1
    %s1594 = scalar_lea.sflag [#allocation4], 1
    %1595 = vsyncpa %s1594, 1

</llo_original>
